<compile_context>
chip_gen: v6e
topology: v6e:2x2x1
jax: 0.10.0
libtpu: 0.0.40
codegen_flags: <defaults>
</compile_context>

<pallas_src>
import functools

import jax
import jax.numpy as jnp
from jax.experimental import pallas as pl
from jax.experimental.pallas import tpu as pltpu

EPS = 1e-5


def generator_kernel(w_ref, b_ref, alpha_ref, x_ref, gamma_ref, beta_ref, o_ref):
    """Fused 1x1-conv + PReLU + LayerNorm([C_out, F]) for one (b, t-tile) block.

    w_ref:     (C_out, C_in)      SMEM   conv weight (1x1 kernel squeezed)
    b_ref:     (C_out,)           SMEM   conv bias
    alpha_ref: (1,)               SMEM   PReLU slope (single shared parameter)
    x_ref:     (C_in, tile_t, F)  VMEM
    gamma_ref: (C_out, F)         VMEM   LayerNorm weight (native layout)
    beta_ref:  (C_out, F)         VMEM   LayerNorm bias   (native layout)
    o_ref:     (C_out, tile_t, F) VMEM
    """
    Cin = x_ref.shape[0]
    Cout, F = gamma_ref.shape
    alpha = alpha_ref[0]
    inv_cf = 1.0 / float(Cout * F)

    # ---- 1x1 conv: stream input channel planes, accumulate Cout planes ------
    # y[o] = sum_c w[o, c] * x[c] + b[o]  — scalar-broadcast mul/add on the VPU.
    x0 = x_ref[0].astype(jnp.float32)                       # (tile_t, F)
    ys = [x0 * w_ref[o, 0] for o in range(Cout)]            # Cout independent chains
    for c in range(1, Cin):
        xc = x_ref[c].astype(jnp.float32)                   # one plane live at a time
        for o in range(Cout):
            ys[o] = ys[o] + xc * w_ref[o, c]

    # ---- bias + PReLU + partial row-sums for the LN mean ---------------------
    ssum = None
    for o in range(Cout):
        y = ys[o] + b_ref[o]
        y = jnp.where(y >= 0.0, y, alpha * y)               # PReLU (shared slope)
        ys[o] = y
        s = jnp.sum(y, axis=-1, keepdims=True)              # (tile_t, 1) lane reduce (XLU)
        ssum = s if ssum is None else ssum + s

    # ---- cfLN: LayerNorm over the (C_out, F) plane of each (b, t) position ---
    mean = ssum * inv_cf                                    # (tile_t, 1)

    vsum = None
    for o in range(Cout):
        c_o = ys[o] - mean
        ys[o] = c_o                                         # reuse centered value below
        v = jnp.sum(c_o * c_o, axis=-1, keepdims=True)
        vsum = v if vsum is None else vsum + v
    inv_std = jax.lax.rsqrt(vsum * inv_cf + EPS)            # (tile_t, 1)  (EUP rsqrt)

    for o in range(Cout):
        g = gamma_ref[o:o + 1, :].astype(jnp.float32)       # (1, F)
        bt = beta_ref[o:o + 1, :].astype(jnp.float32)       # (1, F)
        out_o = ys[o] * inv_std * g + bt
        o_ref[o, :, :] = out_o.astype(o_ref.dtype)          # lane-dense (tile_t, F) store


def _pick_tile_t(T, target=256):
    """Pick a T-tile: full extent if small, else a large multiple of 8.

    tile_t=256 keeps the double-buffered in+out working set (f32, F padded to
    256 lanes in VMEM) around ~20 MiB, which fits v5e/v6e/v7x with the raised
    vmem limit below while keeping per-step overhead (~0.35 us) negligible.
    """
    if T <= target:
        return T
    return max(8, (target // 8) * 8)


@functools.partial(jax.jit, static_argnames=("tile_t",))
def generator_forward(x, w, b, alpha, gamma, beta, tile_t=None):
    """x: (B, C_in, T, F) -> (B, C_out, T, F)  (matches the PyTorch module)."""
    B, Cin, T, F = x.shape
    Cout = w.shape[0]
    if tile_t is None:
        tile_t = _pick_tile_t(T)

    grid = (B, pl.cdiv(T, tile_t))

    out = pl.pallas_call(
        generator_kernel,
        out_shape=jax.ShapeDtypeStruct((B, Cout, T, F), x.dtype),
        grid_spec=pltpu.PrefetchScalarGridSpec(
            num_scalar_prefetch=0,
            grid=grid,
            in_specs=[
                pl.BlockSpec(memory_space=pltpu.MemorySpace.SMEM),     # w (Cout, Cin)
                pl.BlockSpec(memory_space=pltpu.MemorySpace.SMEM),     # b (Cout,)
                pl.BlockSpec(memory_space=pltpu.MemorySpace.SMEM),     # alpha (1,)
                pl.BlockSpec((None, Cin, tile_t, F), lambda bb, tt: (bb, 0, tt, 0)),
                pl.BlockSpec((Cout, F), lambda bb, tt: (0, 0)),        # gamma
                pl.BlockSpec((Cout, F), lambda bb, tt: (0, 0)),        # beta
            ],
            out_specs=pl.BlockSpec((None, Cout, tile_t, F),
                                   lambda bb, tt: (bb, 0, tt, 0)),
        ),
        compiler_params=pltpu.CompilerParams(
            dimension_semantics=("parallel", "parallel"),  # megacore-shardable grid
            vmem_limit_bytes=48 * 1024 * 1024,             # < 64 MiB physical on v7x
        ),
    )(
        w.astype(jnp.float32),
        b.reshape(Cout).astype(jnp.float32),
        alpha.reshape(1).astype(jnp.float32),
        x,
        gamma,
        beta,
    )
    return out


def generator_reference(x, w, b, alpha, gamma, beta):
    """Pure-JAX reference mirroring the PyTorch forward exactly."""
    y = jnp.einsum("bitf,oi->botf", x, w) + b[None, :, None, None]
    y = jnp.where(y >= 0.0, y, alpha * y)                 # PReLU
    yt = jnp.transpose(y, (0, 2, 1, 3))                   # (B, T, Cout, F)
    mean = yt.mean(axis=(2, 3), keepdims=True)
    var = ((yt - mean) ** 2).mean(axis=(2, 3), keepdims=True)
    yn = (yt - mean) / jnp.sqrt(var + EPS) * gamma[None, None] + beta[None, None]
    return jnp.transpose(yn, (0, 2, 1, 3))                # (B, Cout, T, F)


if __name__ == "__main__":
    # Module defaults: input_dim=32, output_dim=4, F=129; small B/T.
    B, T = 2, 8
    Cin, Cout, F = 32, 4, 129

    key = jax.random.PRNGKey(0)
    kx, kw, kb, kg, kbt = jax.random.split(key, 5)

    x = jax.random.normal(kx, (B, Cin, T, F), dtype=jnp.float32)

    # Deterministic synthetic parameters (shapes match nn.Conv2d(32,4,1),
    # nn.PReLU(), nn.LayerNorm([4,129])).
    w = jax.random.normal(kw, (Cout, Cin), dtype=jnp.float32) * 0.1   # conv weight
    b = jax.random.normal(kb, (Cout,), dtype=jnp.float32) * 0.1       # conv bias
    alpha = jnp.array(0.25, dtype=jnp.float32)                        # PReLU default init
    gamma = 1.0 + 0.1 * jax.random.normal(kg, (Cout, F), dtype=jnp.float32)   # LN weight
    beta = 0.1 * jax.random.normal(kbt, (Cout, F), dtype=jnp.float32)         # LN bias

    out = generator_forward(x, w, b, alpha, gamma, beta)
    out = jax.block_until_ready(out)

    ref = generator_reference(x, w, b, alpha, gamma, beta)
    assert out.shape == (B, Cout, T, F), out.shape
    assert jnp.allclose(out, ref, atol=1e-4, rtol=1e-4), float(jnp.max(jnp.abs(out - ref)))

    print("KERNEL_OK")
</pallas_src>

<mosaic_0001>
module attributes {stable_mosaic.version = 11 : i64} {
  func.func @generator_kernel(%arg0: i32, %arg1: i32, %arg2: memref<4x32xf32, #tpu.memory_space<smem>>, %arg3: memref<4xf32, #tpu.memory_space<smem>>, %arg4: memref<1xf32, #tpu.memory_space<smem>>, %arg5: memref<1x32x8x129xf32, #tpu.memory_space<vmem>>, %arg6: memref<4x129xf32, #tpu.memory_space<vmem>>, %arg7: memref<4x129xf32, #tpu.memory_space<vmem>>, %arg8: memref<1x4x8x129xf32, #tpu.memory_space<vmem>>) attributes {dimension_semantics = [#tpu.dimension_semantics<parallel>, #tpu.dimension_semantics<parallel>], iteration_bounds = array<i64: 2, 1>, scalar_prefetch = 0 : i64, scratch_operands = 0 : i64, tpu.core_type = #tpu.core_type<tc>, window_params = [{transform_indices = @transform_0, window_bounds = array<i64: 4, 32>}, {transform_indices = @transform_1, window_bounds = array<i64: 4>}, {transform_indices = @transform_2, window_bounds = array<i64: 1>}, {transform_indices = @transform_3, window_bounds = array<i64: 1, 32, 8, 129>}, {pipeline_mode = #tpu.pipeline_mode<synchronous>, transform_indices = @transform_4, window_bounds = array<i64: 4, 129>}, {pipeline_mode = #tpu.pipeline_mode<synchronous>, transform_indices = @transform_5, window_bounds = array<i64: 4, 129>}, {transform_indices = @transform_6, window_bounds = array<i64: 1, 4, 8, 129>}]} {
    %c0 = arith.constant 0 : index
    %0 = memref.load %arg4[%c0] : memref<1xf32, #tpu.memory_space<smem>>
    %c0_0 = arith.constant 0 : index
    %c0_1 = arith.constant 0 : index
    %c0_2 = arith.constant 0 : index
    %c0_3 = arith.constant 0 : index
    %1 = vector.load %arg5[%c0_0, %c0_1, %c0_2, %c0_3] : memref<1x32x8x129xf32, #tpu.memory_space<vmem>>, vector<1x1x8x129xf32>
    %2 = vector.shape_cast %1 : vector<1x1x8x129xf32> to vector<8x129xf32>
    %c0_4 = arith.constant 0 : index
    %c0_5 = arith.constant 0 : index
    %3 = memref.load %arg2[%c0_4, %c0_5] : memref<4x32xf32, #tpu.memory_space<smem>>
    %4 = vector.broadcast %3 : f32 to vector<8x129xf32>
    %5 = arith.mulf %2, %4 : vector<8x129xf32>
    %c1 = arith.constant 1 : index
    %c0_6 = arith.constant 0 : index
    %6 = memref.load %arg2[%c1, %c0_6] : memref<4x32xf32, #tpu.memory_space<smem>>
    %7 = vector.broadcast %6 : f32 to vector<8x129xf32>
    %8 = arith.mulf %2, %7 : vector<8x129xf32>
    %c2 = arith.constant 2 : index
    %c0_7 = arith.constant 0 : index
    %9 = memref.load %arg2[%c2, %c0_7] : memref<4x32xf32, #tpu.memory_space<smem>>
    %10 = vector.broadcast %9 : f32 to vector<8x129xf32>
    %11 = arith.mulf %2, %10 : vector<8x129xf32>
    %c3 = arith.constant 3 : index
    %c0_8 = arith.constant 0 : index
    %12 = memref.load %arg2[%c3, %c0_8] : memref<4x32xf32, #tpu.memory_space<smem>>
    %13 = vector.broadcast %12 : f32 to vector<8x129xf32>
    %14 = arith.mulf %2, %13 : vector<8x129xf32>
    %c0_9 = arith.constant 0 : index
    %c1_10 = arith.constant 1 : index
    %c0_11 = arith.constant 0 : index
    %c0_12 = arith.constant 0 : index
    %15 = vector.load %arg5[%c0_9, %c1_10, %c0_11, %c0_12] : memref<1x32x8x129xf32, #tpu.memory_space<vmem>>, vector<1x1x8x129xf32>
    %16 = vector.shape_cast %15 : vector<1x1x8x129xf32> to vector<8x129xf32>
    %c0_13 = arith.constant 0 : index
    %c1_14 = arith.constant 1 : index
    %17 = memref.load %arg2[%c0_13, %c1_14] : memref<4x32xf32, #tpu.memory_space<smem>>
    %18 = vector.broadcast %17 : f32 to vector<8x129xf32>
    %19 = arith.mulf %16, %18 : vector<8x129xf32>
    %20 = arith.addf %5, %19 : vector<8x129xf32>
    %c1_15 = arith.constant 1 : index
    %c1_16 = arith.constant 1 : index
    %21 = memref.load %arg2[%c1_15, %c1_16] : memref<4x32xf32, #tpu.memory_space<smem>>
    %22 = vector.broadcast %21 : f32 to vector<8x129xf32>
    %23 = arith.mulf %16, %22 : vector<8x129xf32>
    %24 = arith.addf %8, %23 : vector<8x129xf32>
    %c2_17 = arith.constant 2 : index
    %c1_18 = arith.constant 1 : index
    %25 = memref.load %arg2[%c2_17, %c1_18] : memref<4x32xf32, #tpu.memory_space<smem>>
    %26 = vector.broadcast %25 : f32 to vector<8x129xf32>
    %27 = arith.mulf %16, %26 : vector<8x129xf32>
    %28 = arith.addf %11, %27 : vector<8x129xf32>
    %c3_19 = arith.constant 3 : index
    %c1_20 = arith.constant 1 : index
    %29 = memref.load %arg2[%c3_19, %c1_20] : memref<4x32xf32, #tpu.memory_space<smem>>
    %30 = vector.broadcast %29 : f32 to vector<8x129xf32>
    %31 = arith.mulf %16, %30 : vector<8x129xf32>
    %32 = arith.addf %14, %31 : vector<8x129xf32>
    %c0_21 = arith.constant 0 : index
    %c2_22 = arith.constant 2 : index
    %c0_23 = arith.constant 0 : index
    %c0_24 = arith.constant 0 : index
    %33 = vector.load %arg5[%c0_21, %c2_22, %c0_23, %c0_24] : memref<1x32x8x129xf32, #tpu.memory_space<vmem>>, vector<1x1x8x129xf32>
    %34 = vector.shape_cast %33 : vector<1x1x8x129xf32> to vector<8x129xf32>
    %c0_25 = arith.constant 0 : index
    %c2_26 = arith.constant 2 : index
    %35 = memref.load %arg2[%c0_25, %c2_26] : memref<4x32xf32, #tpu.memory_space<smem>>
    %36 = vector.broadcast %35 : f32 to vector<8x129xf32>
    %37 = arith.mulf %34, %36 : vector<8x129xf32>
    %38 = arith.addf %20, %37 : vector<8x129xf32>
    %c1_27 = arith.constant 1 : index
    %c2_28 = arith.constant 2 : index
    %39 = memref.load %arg2[%c1_27, %c2_28] : memref<4x32xf32, #tpu.memory_space<smem>>
    %40 = vector.broadcast %39 : f32 to vector<8x129xf32>
    %41 = arith.mulf %34, %40 : vector<8x129xf32>
    %42 = arith.addf %24, %41 : vector<8x129xf32>
    %c2_29 = arith.constant 2 : index
    %c2_30 = arith.constant 2 : index
    %43 = memref.load %arg2[%c2_29, %c2_30] : memref<4x32xf32, #tpu.memory_space<smem>>
    %44 = vector.broadcast %43 : f32 to vector<8x129xf32>
    %45 = arith.mulf %34, %44 : vector<8x129xf32>
    %46 = arith.addf %28, %45 : vector<8x129xf32>
    %c3_31 = arith.constant 3 : index
    %c2_32 = arith.constant 2 : index
    %47 = memref.load %arg2[%c3_31, %c2_32] : memref<4x32xf32, #tpu.memory_space<smem>>
    %48 = vector.broadcast %47 : f32 to vector<8x129xf32>
    %49 = arith.mulf %34, %48 : vector<8x129xf32>
    %50 = arith.addf %32, %49 : vector<8x129xf32>
    %c0_33 = arith.constant 0 : index
    %c3_34 = arith.constant 3 : index
    %c0_35 = arith.constant 0 : index
    %c0_36 = arith.constant 0 : index
    %51 = vector.load %arg5[%c0_33, %c3_34, %c0_35, %c0_36] : memref<1x32x8x129xf32, #tpu.memory_space<vmem>>, vector<1x1x8x129xf32>
    %52 = vector.shape_cast %51 : vector<1x1x8x129xf32> to vector<8x129xf32>
    %c0_37 = arith.constant 0 : index
    %c3_38 = arith.constant 3 : index
    %53 = memref.load %arg2[%c0_37, %c3_38] : memref<4x32xf32, #tpu.memory_space<smem>>
    %54 = vector.broadcast %53 : f32 to vector<8x129xf32>
    %55 = arith.mulf %52, %54 : vector<8x129xf32>
    %56 = arith.addf %38, %55 : vector<8x129xf32>
    %c1_39 = arith.constant 1 : index
    %c3_40 = arith.constant 3 : index
    %57 = memref.load %arg2[%c1_39, %c3_40] : memref<4x32xf32, #tpu.memory_space<smem>>
    %58 = vector.broadcast %57 : f32 to vector<8x129xf32>
    %59 = arith.mulf %52, %58 : vector<8x129xf32>
    %60 = arith.addf %42, %59 : vector<8x129xf32>
    %c2_41 = arith.constant 2 : index
    %c3_42 = arith.constant 3 : index
    %61 = memref.load %arg2[%c2_41, %c3_42] : memref<4x32xf32, #tpu.memory_space<smem>>
    %62 = vector.broadcast %61 : f32 to vector<8x129xf32>
    %63 = arith.mulf %52, %62 : vector<8x129xf32>
    %64 = arith.addf %46, %63 : vector<8x129xf32>
    %c3_43 = arith.constant 3 : index
    %c3_44 = arith.constant 3 : index
    %65 = memref.load %arg2[%c3_43, %c3_44] : memref<4x32xf32, #tpu.memory_space<smem>>
    %66 = vector.broadcast %65 : f32 to vector<8x129xf32>
    %67 = arith.mulf %52, %66 : vector<8x129xf32>
    %68 = arith.addf %50, %67 : vector<8x129xf32>
    %c0_45 = arith.constant 0 : index
    %c4 = arith.constant 4 : index
    %c0_46 = arith.constant 0 : index
    %c0_47 = arith.constant 0 : index
    %69 = vector.load %arg5[%c0_45, %c4, %c0_46, %c0_47] : memref<1x32x8x129xf32, #tpu.memory_space<vmem>>, vector<1x1x8x129xf32>
    %70 = vector.shape_cast %69 : vector<1x1x8x129xf32> to vector<8x129xf32>
    %c0_48 = arith.constant 0 : index
    %c4_49 = arith.constant 4 : index
    %71 = memref.load %arg2[%c0_48, %c4_49] : memref<4x32xf32, #tpu.memory_space<smem>>
    %72 = vector.broadcast %71 : f32 to vector<8x129xf32>
    %73 = arith.mulf %70, %72 : vector<8x129xf32>
    %74 = arith.addf %56, %73 : vector<8x129xf32>
    %c1_50 = arith.constant 1 : index
    %c4_51 = arith.constant 4 : index
    %75 = memref.load %arg2[%c1_50, %c4_51] : memref<4x32xf32, #tpu.memory_space<smem>>
    %76 = vector.broadcast %75 : f32 to vector<8x129xf32>
    %77 = arith.mulf %70, %76 : vector<8x129xf32>
    %78 = arith.addf %60, %77 : vector<8x129xf32>
    %c2_52 = arith.constant 2 : index
    %c4_53 = arith.constant 4 : index
    %79 = memref.load %arg2[%c2_52, %c4_53] : memref<4x32xf32, #tpu.memory_space<smem>>
    %80 = vector.broadcast %79 : f32 to vector<8x129xf32>
    %81 = arith.mulf %70, %80 : vector<8x129xf32>
    %82 = arith.addf %64, %81 : vector<8x129xf32>
    %c3_54 = arith.constant 3 : index
    %c4_55 = arith.constant 4 : index
    %83 = memref.load %arg2[%c3_54, %c4_55] : memref<4x32xf32, #tpu.memory_space<smem>>
    %84 = vector.broadcast %83 : f32 to vector<8x129xf32>
    %85 = arith.mulf %70, %84 : vector<8x129xf32>
    %86 = arith.addf %68, %85 : vector<8x129xf32>
    %c0_56 = arith.constant 0 : index
    %c5 = arith.constant 5 : index
    %c0_57 = arith.constant 0 : index
    %c0_58 = arith.constant 0 : index
    %87 = vector.load %arg5[%c0_56, %c5, %c0_57, %c0_58] : memref<1x32x8x129xf32, #tpu.memory_space<vmem>>, vector<1x1x8x129xf32>
    %88 = vector.shape_cast %87 : vector<1x1x8x129xf32> to vector<8x129xf32>
    %c0_59 = arith.constant 0 : index
    %c5_60 = arith.constant 5 : index
    %89 = memref.load %arg2[%c0_59, %c5_60] : memref<4x32xf32, #tpu.memory_space<smem>>
    %90 = vector.broadcast %89 : f32 to vector<8x129xf32>
    %91 = arith.mulf %88, %90 : vector<8x129xf32>
    %92 = arith.addf %74, %91 : vector<8x129xf32>
    %c1_61 = arith.constant 1 : index
    %c5_62 = arith.constant 5 : index
    %93 = memref.load %arg2[%c1_61, %c5_62] : memref<4x32xf32, #tpu.memory_space<smem>>
    %94 = vector.broadcast %93 : f32 to vector<8x129xf32>
    %95 = arith.mulf %88, %94 : vector<8x129xf32>
    %96 = arith.addf %78, %95 : vector<8x129xf32>
    %c2_63 = arith.constant 2 : index
    %c5_64 = arith.constant 5 : index
    %97 = memref.load %arg2[%c2_63, %c5_64] : memref<4x32xf32, #tpu.memory_space<smem>>
    %98 = vector.broadcast %97 : f32 to vector<8x129xf32>
    %99 = arith.mulf %88, %98 : vector<8x129xf32>
    %100 = arith.addf %82, %99 : vector<8x129xf32>
    %c3_65 = arith.constant 3 : index
    %c5_66 = arith.constant 5 : index
    %101 = memref.load %arg2[%c3_65, %c5_66] : memref<4x32xf32, #tpu.memory_space<smem>>
    %102 = vector.broadcast %101 : f32 to vector<8x129xf32>
    %103 = arith.mulf %88, %102 : vector<8x129xf32>
    %104 = arith.addf %86, %103 : vector<8x129xf32>
    %c0_67 = arith.constant 0 : index
    %c6 = arith.constant 6 : index
    %c0_68 = arith.constant 0 : index
    %c0_69 = arith.constant 0 : index
    %105 = vector.load %arg5[%c0_67, %c6, %c0_68, %c0_69] : memref<1x32x8x129xf32, #tpu.memory_space<vmem>>, vector<1x1x8x129xf32>
    %106 = vector.shape_cast %105 : vector<1x1x8x129xf32> to vector<8x129xf32>
    %c0_70 = arith.constant 0 : index
    %c6_71 = arith.constant 6 : index
    %107 = memref.load %arg2[%c0_70, %c6_71] : memref<4x32xf32, #tpu.memory_space<smem>>
    %108 = vector.broadcast %107 : f32 to vector<8x129xf32>
    %109 = arith.mulf %106, %108 : vector<8x129xf32>
    %110 = arith.addf %92, %109 : vector<8x129xf32>
    %c1_72 = arith.constant 1 : index
    %c6_73 = arith.constant 6 : index
    %111 = memref.load %arg2[%c1_72, %c6_73] : memref<4x32xf32, #tpu.memory_space<smem>>
    %112 = vector.broadcast %111 : f32 to vector<8x129xf32>
    %113 = arith.mulf %106, %112 : vector<8x129xf32>
    %114 = arith.addf %96, %113 : vector<8x129xf32>
    %c2_74 = arith.constant 2 : index
    %c6_75 = arith.constant 6 : index
    %115 = memref.load %arg2[%c2_74, %c6_75] : memref<4x32xf32, #tpu.memory_space<smem>>
    %116 = vector.broadcast %115 : f32 to vector<8x129xf32>
    %117 = arith.mulf %106, %116 : vector<8x129xf32>
    %118 = arith.addf %100, %117 : vector<8x129xf32>
    %c3_76 = arith.constant 3 : index
    %c6_77 = arith.constant 6 : index
    %119 = memref.load %arg2[%c3_76, %c6_77] : memref<4x32xf32, #tpu.memory_space<smem>>
    %120 = vector.broadcast %119 : f32 to vector<8x129xf32>
    %121 = arith.mulf %106, %120 : vector<8x129xf32>
    %122 = arith.addf %104, %121 : vector<8x129xf32>
    %c0_78 = arith.constant 0 : index
    %c7 = arith.constant 7 : index
    %c0_79 = arith.constant 0 : index
    %c0_80 = arith.constant 0 : index
    %123 = vector.load %arg5[%c0_78, %c7, %c0_79, %c0_80] : memref<1x32x8x129xf32, #tpu.memory_space<vmem>>, vector<1x1x8x129xf32>
    %124 = vector.shape_cast %123 : vector<1x1x8x129xf32> to vector<8x129xf32>
    %c0_81 = arith.constant 0 : index
    %c7_82 = arith.constant 7 : index
    %125 = memref.load %arg2[%c0_81, %c7_82] : memref<4x32xf32, #tpu.memory_space<smem>>
    %126 = vector.broadcast %125 : f32 to vector<8x129xf32>
    %127 = arith.mulf %124, %126 : vector<8x129xf32>
    %128 = arith.addf %110, %127 : vector<8x129xf32>
    %c1_83 = arith.constant 1 : index
    %c7_84 = arith.constant 7 : index
    %129 = memref.load %arg2[%c1_83, %c7_84] : memref<4x32xf32, #tpu.memory_space<smem>>
    %130 = vector.broadcast %129 : f32 to vector<8x129xf32>
    %131 = arith.mulf %124, %130 : vector<8x129xf32>
    %132 = arith.addf %114, %131 : vector<8x129xf32>
    %c2_85 = arith.constant 2 : index
    %c7_86 = arith.constant 7 : index
    %133 = memref.load %arg2[%c2_85, %c7_86] : memref<4x32xf32, #tpu.memory_space<smem>>
    %134 = vector.broadcast %133 : f32 to vector<8x129xf32>
    %135 = arith.mulf %124, %134 : vector<8x129xf32>
    %136 = arith.addf %118, %135 : vector<8x129xf32>
    %c3_87 = arith.constant 3 : index
    %c7_88 = arith.constant 7 : index
    %137 = memref.load %arg2[%c3_87, %c7_88] : memref<4x32xf32, #tpu.memory_space<smem>>
    %138 = vector.broadcast %137 : f32 to vector<8x129xf32>
    %139 = arith.mulf %124, %138 : vector<8x129xf32>
    %140 = arith.addf %122, %139 : vector<8x129xf32>
    %c0_89 = arith.constant 0 : index
    %c8 = arith.constant 8 : index
    %c0_90 = arith.constant 0 : index
    %c0_91 = arith.constant 0 : index
    %141 = vector.load %arg5[%c0_89, %c8, %c0_90, %c0_91] : memref<1x32x8x129xf32, #tpu.memory_space<vmem>>, vector<1x1x8x129xf32>
    %142 = vector.shape_cast %141 : vector<1x1x8x129xf32> to vector<8x129xf32>
    %c0_92 = arith.constant 0 : index
    %c8_93 = arith.constant 8 : index
    %143 = memref.load %arg2[%c0_92, %c8_93] : memref<4x32xf32, #tpu.memory_space<smem>>
    %144 = vector.broadcast %143 : f32 to vector<8x129xf32>
    %145 = arith.mulf %142, %144 : vector<8x129xf32>
    %146 = arith.addf %128, %145 : vector<8x129xf32>
    %c1_94 = arith.constant 1 : index
    %c8_95 = arith.constant 8 : index
    %147 = memref.load %arg2[%c1_94, %c8_95] : memref<4x32xf32, #tpu.memory_space<smem>>
    %148 = vector.broadcast %147 : f32 to vector<8x129xf32>
    %149 = arith.mulf %142, %148 : vector<8x129xf32>
    %150 = arith.addf %132, %149 : vector<8x129xf32>
    %c2_96 = arith.constant 2 : index
    %c8_97 = arith.constant 8 : index
    %151 = memref.load %arg2[%c2_96, %c8_97] : memref<4x32xf32, #tpu.memory_space<smem>>
    %152 = vector.broadcast %151 : f32 to vector<8x129xf32>
    %153 = arith.mulf %142, %152 : vector<8x129xf32>
    %154 = arith.addf %136, %153 : vector<8x129xf32>
    %c3_98 = arith.constant 3 : index
    %c8_99 = arith.constant 8 : index
    %155 = memref.load %arg2[%c3_98, %c8_99] : memref<4x32xf32, #tpu.memory_space<smem>>
    %156 = vector.broadcast %155 : f32 to vector<8x129xf32>
    %157 = arith.mulf %142, %156 : vector<8x129xf32>
    %158 = arith.addf %140, %157 : vector<8x129xf32>
    %c0_100 = arith.constant 0 : index
    %c9 = arith.constant 9 : index
    %c0_101 = arith.constant 0 : index
    %c0_102 = arith.constant 0 : index
    %159 = vector.load %arg5[%c0_100, %c9, %c0_101, %c0_102] : memref<1x32x8x129xf32, #tpu.memory_space<vmem>>, vector<1x1x8x129xf32>
    %160 = vector.shape_cast %159 : vector<1x1x8x129xf32> to vector<8x129xf32>
    %c0_103 = arith.constant 0 : index
    %c9_104 = arith.constant 9 : index
    %161 = memref.load %arg2[%c0_103, %c9_104] : memref<4x32xf32, #tpu.memory_space<smem>>
    %162 = vector.broadcast %161 : f32 to vector<8x129xf32>
    %163 = arith.mulf %160, %162 : vector<8x129xf32>
    %164 = arith.addf %146, %163 : vector<8x129xf32>
    %c1_105 = arith.constant 1 : index
    %c9_106 = arith.constant 9 : index
    %165 = memref.load %arg2[%c1_105, %c9_106] : memref<4x32xf32, #tpu.memory_space<smem>>
    %166 = vector.broadcast %165 : f32 to vector<8x129xf32>
    %167 = arith.mulf %160, %166 : vector<8x129xf32>
    %168 = arith.addf %150, %167 : vector<8x129xf32>
    %c2_107 = arith.constant 2 : index
    %c9_108 = arith.constant 9 : index
    %169 = memref.load %arg2[%c2_107, %c9_108] : memref<4x32xf32, #tpu.memory_space<smem>>
    %170 = vector.broadcast %169 : f32 to vector<8x129xf32>
    %171 = arith.mulf %160, %170 : vector<8x129xf32>
    %172 = arith.addf %154, %171 : vector<8x129xf32>
    %c3_109 = arith.constant 3 : index
    %c9_110 = arith.constant 9 : index
    %173 = memref.load %arg2[%c3_109, %c9_110] : memref<4x32xf32, #tpu.memory_space<smem>>
    %174 = vector.broadcast %173 : f32 to vector<8x129xf32>
    %175 = arith.mulf %160, %174 : vector<8x129xf32>
    %176 = arith.addf %158, %175 : vector<8x129xf32>
    %c0_111 = arith.constant 0 : index
    %c10 = arith.constant 10 : index
    %c0_112 = arith.constant 0 : index
    %c0_113 = arith.constant 0 : index
    %177 = vector.load %arg5[%c0_111, %c10, %c0_112, %c0_113] : memref<1x32x8x129xf32, #tpu.memory_space<vmem>>, vector<1x1x8x129xf32>
    %178 = vector.shape_cast %177 : vector<1x1x8x129xf32> to vector<8x129xf32>
    %c0_114 = arith.constant 0 : index
    %c10_115 = arith.constant 10 : index
    %179 = memref.load %arg2[%c0_114, %c10_115] : memref<4x32xf32, #tpu.memory_space<smem>>
    %180 = vector.broadcast %179 : f32 to vector<8x129xf32>
    %181 = arith.mulf %178, %180 : vector<8x129xf32>
    %182 = arith.addf %164, %181 : vector<8x129xf32>
    %c1_116 = arith.constant 1 : index
    %c10_117 = arith.constant 10 : index
    %183 = memref.load %arg2[%c1_116, %c10_117] : memref<4x32xf32, #tpu.memory_space<smem>>
    %184 = vector.broadcast %183 : f32 to vector<8x129xf32>
    %185 = arith.mulf %178, %184 : vector<8x129xf32>
    %186 = arith.addf %168, %185 : vector<8x129xf32>
    %c2_118 = arith.constant 2 : index
    %c10_119 = arith.constant 10 : index
    %187 = memref.load %arg2[%c2_118, %c10_119] : memref<4x32xf32, #tpu.memory_space<smem>>
    %188 = vector.broadcast %187 : f32 to vector<8x129xf32>
    %189 = arith.mulf %178, %188 : vector<8x129xf32>
    %190 = arith.addf %172, %189 : vector<8x129xf32>
    %c3_120 = arith.constant 3 : index
    %c10_121 = arith.constant 10 : index
    %191 = memref.load %arg2[%c3_120, %c10_121] : memref<4x32xf32, #tpu.memory_space<smem>>
    %192 = vector.broadcast %191 : f32 to vector<8x129xf32>
    %193 = arith.mulf %178, %192 : vector<8x129xf32>
    %194 = arith.addf %176, %193 : vector<8x129xf32>
    %c0_122 = arith.constant 0 : index
    %c11 = arith.constant 11 : index
    %c0_123 = arith.constant 0 : index
    %c0_124 = arith.constant 0 : index
    %195 = vector.load %arg5[%c0_122, %c11, %c0_123, %c0_124] : memref<1x32x8x129xf32, #tpu.memory_space<vmem>>, vector<1x1x8x129xf32>
    %196 = vector.shape_cast %195 : vector<1x1x8x129xf32> to vector<8x129xf32>
    %c0_125 = arith.constant 0 : index
    %c11_126 = arith.constant 11 : index
    %197 = memref.load %arg2[%c0_125, %c11_126] : memref<4x32xf32, #tpu.memory_space<smem>>
    %198 = vector.broadcast %197 : f32 to vector<8x129xf32>
    %199 = arith.mulf %196, %198 : vector<8x129xf32>
    %200 = arith.addf %182, %199 : vector<8x129xf32>
    %c1_127 = arith.constant 1 : index
    %c11_128 = arith.constant 11 : index
    %201 = memref.load %arg2[%c1_127, %c11_128] : memref<4x32xf32, #tpu.memory_space<smem>>
    %202 = vector.broadcast %201 : f32 to vector<8x129xf32>
    %203 = arith.mulf %196, %202 : vector<8x129xf32>
    %204 = arith.addf %186, %203 : vector<8x129xf32>
    %c2_129 = arith.constant 2 : index
    %c11_130 = arith.constant 11 : index
    %205 = memref.load %arg2[%c2_129, %c11_130] : memref<4x32xf32, #tpu.memory_space<smem>>
    %206 = vector.broadcast %205 : f32 to vector<8x129xf32>
    %207 = arith.mulf %196, %206 : vector<8x129xf32>
    %208 = arith.addf %190, %207 : vector<8x129xf32>
    %c3_131 = arith.constant 3 : index
    %c11_132 = arith.constant 11 : index
    %209 = memref.load %arg2[%c3_131, %c11_132] : memref<4x32xf32, #tpu.memory_space<smem>>
    %210 = vector.broadcast %209 : f32 to vector<8x129xf32>
    %211 = arith.mulf %196, %210 : vector<8x129xf32>
    %212 = arith.addf %194, %211 : vector<8x129xf32>
    %c0_133 = arith.constant 0 : index
    %c12 = arith.constant 12 : index
    %c0_134 = arith.constant 0 : index
    %c0_135 = arith.constant 0 : index
    %213 = vector.load %arg5[%c0_133, %c12, %c0_134, %c0_135] : memref<1x32x8x129xf32, #tpu.memory_space<vmem>>, vector<1x1x8x129xf32>
    %214 = vector.shape_cast %213 : vector<1x1x8x129xf32> to vector<8x129xf32>
    %c0_136 = arith.constant 0 : index
    %c12_137 = arith.constant 12 : index
    %215 = memref.load %arg2[%c0_136, %c12_137] : memref<4x32xf32, #tpu.memory_space<smem>>
    %216 = vector.broadcast %215 : f32 to vector<8x129xf32>
    %217 = arith.mulf %214, %216 : vector<8x129xf32>
    %218 = arith.addf %200, %217 : vector<8x129xf32>
    %c1_138 = arith.constant 1 : index
    %c12_139 = arith.constant 12 : index
    %219 = memref.load %arg2[%c1_138, %c12_139] : memref<4x32xf32, #tpu.memory_space<smem>>
    %220 = vector.broadcast %219 : f32 to vector<8x129xf32>
    %221 = arith.mulf %214, %220 : vector<8x129xf32>
    %222 = arith.addf %204, %221 : vector<8x129xf32>
    %c2_140 = arith.constant 2 : index
    %c12_141 = arith.constant 12 : index
    %223 = memref.load %arg2[%c2_140, %c12_141] : memref<4x32xf32, #tpu.memory_space<smem>>
    %224 = vector.broadcast %223 : f32 to vector<8x129xf32>
    %225 = arith.mulf %214, %224 : vector<8x129xf32>
    %226 = arith.addf %208, %225 : vector<8x129xf32>
    %c3_142 = arith.constant 3 : index
    %c12_143 = arith.constant 12 : index
    %227 = memref.load %arg2[%c3_142, %c12_143] : memref<4x32xf32, #tpu.memory_space<smem>>
    %228 = vector.broadcast %227 : f32 to vector<8x129xf32>
    %229 = arith.mulf %214, %228 : vector<8x129xf32>
    %230 = arith.addf %212, %229 : vector<8x129xf32>
    %c0_144 = arith.constant 0 : index
    %c13 = arith.constant 13 : index
    %c0_145 = arith.constant 0 : index
    %c0_146 = arith.constant 0 : index
    %231 = vector.load %arg5[%c0_144, %c13, %c0_145, %c0_146] : memref<1x32x8x129xf32, #tpu.memory_space<vmem>>, vector<1x1x8x129xf32>
    %232 = vector.shape_cast %231 : vector<1x1x8x129xf32> to vector<8x129xf32>
    %c0_147 = arith.constant 0 : index
    %c13_148 = arith.constant 13 : index
    %233 = memref.load %arg2[%c0_147, %c13_148] : memref<4x32xf32, #tpu.memory_space<smem>>
    %234 = vector.broadcast %233 : f32 to vector<8x129xf32>
    %235 = arith.mulf %232, %234 : vector<8x129xf32>
    %236 = arith.addf %218, %235 : vector<8x129xf32>
    %c1_149 = arith.constant 1 : index
    %c13_150 = arith.constant 13 : index
    %237 = memref.load %arg2[%c1_149, %c13_150] : memref<4x32xf32, #tpu.memory_space<smem>>
    %238 = vector.broadcast %237 : f32 to vector<8x129xf32>
    %239 = arith.mulf %232, %238 : vector<8x129xf32>
    %240 = arith.addf %222, %239 : vector<8x129xf32>
    %c2_151 = arith.constant 2 : index
    %c13_152 = arith.constant 13 : index
    %241 = memref.load %arg2[%c2_151, %c13_152] : memref<4x32xf32, #tpu.memory_space<smem>>
    %242 = vector.broadcast %241 : f32 to vector<8x129xf32>
    %243 = arith.mulf %232, %242 : vector<8x129xf32>
    %244 = arith.addf %226, %243 : vector<8x129xf32>
    %c3_153 = arith.constant 3 : index
    %c13_154 = arith.constant 13 : index
    %245 = memref.load %arg2[%c3_153, %c13_154] : memref<4x32xf32, #tpu.memory_space<smem>>
    %246 = vector.broadcast %245 : f32 to vector<8x129xf32>
    %247 = arith.mulf %232, %246 : vector<8x129xf32>
    %248 = arith.addf %230, %247 : vector<8x129xf32>
    %c0_155 = arith.constant 0 : index
    %c14 = arith.constant 14 : index
    %c0_156 = arith.constant 0 : index
    %c0_157 = arith.constant 0 : index
    %249 = vector.load %arg5[%c0_155, %c14, %c0_156, %c0_157] : memref<1x32x8x129xf32, #tpu.memory_space<vmem>>, vector<1x1x8x129xf32>
    %250 = vector.shape_cast %249 : vector<1x1x8x129xf32> to vector<8x129xf32>
    %c0_158 = arith.constant 0 : index
    %c14_159 = arith.constant 14 : index
    %251 = memref.load %arg2[%c0_158, %c14_159] : memref<4x32xf32, #tpu.memory_space<smem>>
    %252 = vector.broadcast %251 : f32 to vector<8x129xf32>
    %253 = arith.mulf %250, %252 : vector<8x129xf32>
    %254 = arith.addf %236, %253 : vector<8x129xf32>
    %c1_160 = arith.constant 1 : index
    %c14_161 = arith.constant 14 : index
    %255 = memref.load %arg2[%c1_160, %c14_161] : memref<4x32xf32, #tpu.memory_space<smem>>
    %256 = vector.broadcast %255 : f32 to vector<8x129xf32>
    %257 = arith.mulf %250, %256 : vector<8x129xf32>
    %258 = arith.addf %240, %257 : vector<8x129xf32>
    %c2_162 = arith.constant 2 : index
    %c14_163 = arith.constant 14 : index
    %259 = memref.load %arg2[%c2_162, %c14_163] : memref<4x32xf32, #tpu.memory_space<smem>>
    %260 = vector.broadcast %259 : f32 to vector<8x129xf32>
    %261 = arith.mulf %250, %260 : vector<8x129xf32>
    %262 = arith.addf %244, %261 : vector<8x129xf32>
    %c3_164 = arith.constant 3 : index
    %c14_165 = arith.constant 14 : index
    %263 = memref.load %arg2[%c3_164, %c14_165] : memref<4x32xf32, #tpu.memory_space<smem>>
    %264 = vector.broadcast %263 : f32 to vector<8x129xf32>
    %265 = arith.mulf %250, %264 : vector<8x129xf32>
    %266 = arith.addf %248, %265 : vector<8x129xf32>
    %c0_166 = arith.constant 0 : index
    %c15 = arith.constant 15 : index
    %c0_167 = arith.constant 0 : index
    %c0_168 = arith.constant 0 : index
    %267 = vector.load %arg5[%c0_166, %c15, %c0_167, %c0_168] : memref<1x32x8x129xf32, #tpu.memory_space<vmem>>, vector<1x1x8x129xf32>
    %268 = vector.shape_cast %267 : vector<1x1x8x129xf32> to vector<8x129xf32>
    %c0_169 = arith.constant 0 : index
    %c15_170 = arith.constant 15 : index
    %269 = memref.load %arg2[%c0_169, %c15_170] : memref<4x32xf32, #tpu.memory_space<smem>>
    %270 = vector.broadcast %269 : f32 to vector<8x129xf32>
    %271 = arith.mulf %268, %270 : vector<8x129xf32>
    %272 = arith.addf %254, %271 : vector<8x129xf32>
    %c1_171 = arith.constant 1 : index
    %c15_172 = arith.constant 15 : index
    %273 = memref.load %arg2[%c1_171, %c15_172] : memref<4x32xf32, #tpu.memory_space<smem>>
    %274 = vector.broadcast %273 : f32 to vector<8x129xf32>
    %275 = arith.mulf %268, %274 : vector<8x129xf32>
    %276 = arith.addf %258, %275 : vector<8x129xf32>
    %c2_173 = arith.constant 2 : index
    %c15_174 = arith.constant 15 : index
    %277 = memref.load %arg2[%c2_173, %c15_174] : memref<4x32xf32, #tpu.memory_space<smem>>
    %278 = vector.broadcast %277 : f32 to vector<8x129xf32>
    %279 = arith.mulf %268, %278 : vector<8x129xf32>
    %280 = arith.addf %262, %279 : vector<8x129xf32>
    %c3_175 = arith.constant 3 : index
    %c15_176 = arith.constant 15 : index
    %281 = memref.load %arg2[%c3_175, %c15_176] : memref<4x32xf32, #tpu.memory_space<smem>>
    %282 = vector.broadcast %281 : f32 to vector<8x129xf32>
    %283 = arith.mulf %268, %282 : vector<8x129xf32>
    %284 = arith.addf %266, %283 : vector<8x129xf32>
    %c0_177 = arith.constant 0 : index
    %c16 = arith.constant 16 : index
    %c0_178 = arith.constant 0 : index
    %c0_179 = arith.constant 0 : index
    %285 = vector.load %arg5[%c0_177, %c16, %c0_178, %c0_179] : memref<1x32x8x129xf32, #tpu.memory_space<vmem>>, vector<1x1x8x129xf32>
    %286 = vector.shape_cast %285 : vector<1x1x8x129xf32> to vector<8x129xf32>
    %c0_180 = arith.constant 0 : index
    %c16_181 = arith.constant 16 : index
    %287 = memref.load %arg2[%c0_180, %c16_181] : memref<4x32xf32, #tpu.memory_space<smem>>
    %288 = vector.broadcast %287 : f32 to vector<8x129xf32>
    %289 = arith.mulf %286, %288 : vector<8x129xf32>
    %290 = arith.addf %272, %289 : vector<8x129xf32>
    %c1_182 = arith.constant 1 : index
    %c16_183 = arith.constant 16 : index
    %291 = memref.load %arg2[%c1_182, %c16_183] : memref<4x32xf32, #tpu.memory_space<smem>>
    %292 = vector.broadcast %291 : f32 to vector<8x129xf32>
    %293 = arith.mulf %286, %292 : vector<8x129xf32>
    %294 = arith.addf %276, %293 : vector<8x129xf32>
    %c2_184 = arith.constant 2 : index
    %c16_185 = arith.constant 16 : index
    %295 = memref.load %arg2[%c2_184, %c16_185] : memref<4x32xf32, #tpu.memory_space<smem>>
    %296 = vector.broadcast %295 : f32 to vector<8x129xf32>
    %297 = arith.mulf %286, %296 : vector<8x129xf32>
    %298 = arith.addf %280, %297 : vector<8x129xf32>
    %c3_186 = arith.constant 3 : index
    %c16_187 = arith.constant 16 : index
    %299 = memref.load %arg2[%c3_186, %c16_187] : memref<4x32xf32, #tpu.memory_space<smem>>
    %300 = vector.broadcast %299 : f32 to vector<8x129xf32>
    %301 = arith.mulf %286, %300 : vector<8x129xf32>
    %302 = arith.addf %284, %301 : vector<8x129xf32>
    %c0_188 = arith.constant 0 : index
    %c17 = arith.constant 17 : index
    %c0_189 = arith.constant 0 : index
    %c0_190 = arith.constant 0 : index
    %303 = vector.load %arg5[%c0_188, %c17, %c0_189, %c0_190] : memref<1x32x8x129xf32, #tpu.memory_space<vmem>>, vector<1x1x8x129xf32>
    %304 = vector.shape_cast %303 : vector<1x1x8x129xf32> to vector<8x129xf32>
    %c0_191 = arith.constant 0 : index
    %c17_192 = arith.constant 17 : index
    %305 = memref.load %arg2[%c0_191, %c17_192] : memref<4x32xf32, #tpu.memory_space<smem>>
    %306 = vector.broadcast %305 : f32 to vector<8x129xf32>
    %307 = arith.mulf %304, %306 : vector<8x129xf32>
    %308 = arith.addf %290, %307 : vector<8x129xf32>
    %c1_193 = arith.constant 1 : index
    %c17_194 = arith.constant 17 : index
    %309 = memref.load %arg2[%c1_193, %c17_194] : memref<4x32xf32, #tpu.memory_space<smem>>
    %310 = vector.broadcast %309 : f32 to vector<8x129xf32>
    %311 = arith.mulf %304, %310 : vector<8x129xf32>
    %312 = arith.addf %294, %311 : vector<8x129xf32>
    %c2_195 = arith.constant 2 : index
    %c17_196 = arith.constant 17 : index
    %313 = memref.load %arg2[%c2_195, %c17_196] : memref<4x32xf32, #tpu.memory_space<smem>>
    %314 = vector.broadcast %313 : f32 to vector<8x129xf32>
    %315 = arith.mulf %304, %314 : vector<8x129xf32>
    %316 = arith.addf %298, %315 : vector<8x129xf32>
    %c3_197 = arith.constant 3 : index
    %c17_198 = arith.constant 17 : index
    %317 = memref.load %arg2[%c3_197, %c17_198] : memref<4x32xf32, #tpu.memory_space<smem>>
    %318 = vector.broadcast %317 : f32 to vector<8x129xf32>
    %319 = arith.mulf %304, %318 : vector<8x129xf32>
    %320 = arith.addf %302, %319 : vector<8x129xf32>
    %c0_199 = arith.constant 0 : index
    %c18 = arith.constant 18 : index
    %c0_200 = arith.constant 0 : index
    %c0_201 = arith.constant 0 : index
    %321 = vector.load %arg5[%c0_199, %c18, %c0_200, %c0_201] : memref<1x32x8x129xf32, #tpu.memory_space<vmem>>, vector<1x1x8x129xf32>
    %322 = vector.shape_cast %321 : vector<1x1x8x129xf32> to vector<8x129xf32>
    %c0_202 = arith.constant 0 : index
    %c18_203 = arith.constant 18 : index
    %323 = memref.load %arg2[%c0_202, %c18_203] : memref<4x32xf32, #tpu.memory_space<smem>>
    %324 = vector.broadcast %323 : f32 to vector<8x129xf32>
    %325 = arith.mulf %322, %324 : vector<8x129xf32>
    %326 = arith.addf %308, %325 : vector<8x129xf32>
    %c1_204 = arith.constant 1 : index
    %c18_205 = arith.constant 18 : index
    %327 = memref.load %arg2[%c1_204, %c18_205] : memref<4x32xf32, #tpu.memory_space<smem>>
    %328 = vector.broadcast %327 : f32 to vector<8x129xf32>
    %329 = arith.mulf %322, %328 : vector<8x129xf32>
    %330 = arith.addf %312, %329 : vector<8x129xf32>
    %c2_206 = arith.constant 2 : index
    %c18_207 = arith.constant 18 : index
    %331 = memref.load %arg2[%c2_206, %c18_207] : memref<4x32xf32, #tpu.memory_space<smem>>
    %332 = vector.broadcast %331 : f32 to vector<8x129xf32>
    %333 = arith.mulf %322, %332 : vector<8x129xf32>
    %334 = arith.addf %316, %333 : vector<8x129xf32>
    %c3_208 = arith.constant 3 : index
    %c18_209 = arith.constant 18 : index
    %335 = memref.load %arg2[%c3_208, %c18_209] : memref<4x32xf32, #tpu.memory_space<smem>>
    %336 = vector.broadcast %335 : f32 to vector<8x129xf32>
    %337 = arith.mulf %322, %336 : vector<8x129xf32>
    %338 = arith.addf %320, %337 : vector<8x129xf32>
    %c0_210 = arith.constant 0 : index
    %c19 = arith.constant 19 : index
    %c0_211 = arith.constant 0 : index
    %c0_212 = arith.constant 0 : index
    %339 = vector.load %arg5[%c0_210, %c19, %c0_211, %c0_212] : memref<1x32x8x129xf32, #tpu.memory_space<vmem>>, vector<1x1x8x129xf32>
    %340 = vector.shape_cast %339 : vector<1x1x8x129xf32> to vector<8x129xf32>
    %c0_213 = arith.constant 0 : index
    %c19_214 = arith.constant 19 : index
    %341 = memref.load %arg2[%c0_213, %c19_214] : memref<4x32xf32, #tpu.memory_space<smem>>
    %342 = vector.broadcast %341 : f32 to vector<8x129xf32>
    %343 = arith.mulf %340, %342 : vector<8x129xf32>
    %344 = arith.addf %326, %343 : vector<8x129xf32>
    %c1_215 = arith.constant 1 : index
    %c19_216 = arith.constant 19 : index
    %345 = memref.load %arg2[%c1_215, %c19_216] : memref<4x32xf32, #tpu.memory_space<smem>>
    %346 = vector.broadcast %345 : f32 to vector<8x129xf32>
    %347 = arith.mulf %340, %346 : vector<8x129xf32>
    %348 = arith.addf %330, %347 : vector<8x129xf32>
    %c2_217 = arith.constant 2 : index
    %c19_218 = arith.constant 19 : index
    %349 = memref.load %arg2[%c2_217, %c19_218] : memref<4x32xf32, #tpu.memory_space<smem>>
    %350 = vector.broadcast %349 : f32 to vector<8x129xf32>
    %351 = arith.mulf %340, %350 : vector<8x129xf32>
    %352 = arith.addf %334, %351 : vector<8x129xf32>
    %c3_219 = arith.constant 3 : index
    %c19_220 = arith.constant 19 : index
    %353 = memref.load %arg2[%c3_219, %c19_220] : memref<4x32xf32, #tpu.memory_space<smem>>
    %354 = vector.broadcast %353 : f32 to vector<8x129xf32>
    %355 = arith.mulf %340, %354 : vector<8x129xf32>
    %356 = arith.addf %338, %355 : vector<8x129xf32>
    %c0_221 = arith.constant 0 : index
    %c20 = arith.constant 20 : index
    %c0_222 = arith.constant 0 : index
    %c0_223 = arith.constant 0 : index
    %357 = vector.load %arg5[%c0_221, %c20, %c0_222, %c0_223] : memref<1x32x8x129xf32, #tpu.memory_space<vmem>>, vector<1x1x8x129xf32>
    %358 = vector.shape_cast %357 : vector<1x1x8x129xf32> to vector<8x129xf32>
    %c0_224 = arith.constant 0 : index
    %c20_225 = arith.constant 20 : index
    %359 = memref.load %arg2[%c0_224, %c20_225] : memref<4x32xf32, #tpu.memory_space<smem>>
    %360 = vector.broadcast %359 : f32 to vector<8x129xf32>
    %361 = arith.mulf %358, %360 : vector<8x129xf32>
    %362 = arith.addf %344, %361 : vector<8x129xf32>
    %c1_226 = arith.constant 1 : index
    %c20_227 = arith.constant 20 : index
    %363 = memref.load %arg2[%c1_226, %c20_227] : memref<4x32xf32, #tpu.memory_space<smem>>
    %364 = vector.broadcast %363 : f32 to vector<8x129xf32>
    %365 = arith.mulf %358, %364 : vector<8x129xf32>
    %366 = arith.addf %348, %365 : vector<8x129xf32>
    %c2_228 = arith.constant 2 : index
    %c20_229 = arith.constant 20 : index
    %367 = memref.load %arg2[%c2_228, %c20_229] : memref<4x32xf32, #tpu.memory_space<smem>>
    %368 = vector.broadcast %367 : f32 to vector<8x129xf32>
    %369 = arith.mulf %358, %368 : vector<8x129xf32>
    %370 = arith.addf %352, %369 : vector<8x129xf32>
    %c3_230 = arith.constant 3 : index
    %c20_231 = arith.constant 20 : index
    %371 = memref.load %arg2[%c3_230, %c20_231] : memref<4x32xf32, #tpu.memory_space<smem>>
    %372 = vector.broadcast %371 : f32 to vector<8x129xf32>
    %373 = arith.mulf %358, %372 : vector<8x129xf32>
    %374 = arith.addf %356, %373 : vector<8x129xf32>
    %c0_232 = arith.constant 0 : index
    %c21 = arith.constant 21 : index
    %c0_233 = arith.constant 0 : index
    %c0_234 = arith.constant 0 : index
    %375 = vector.load %arg5[%c0_232, %c21, %c0_233, %c0_234] : memref<1x32x8x129xf32, #tpu.memory_space<vmem>>, vector<1x1x8x129xf32>
    %376 = vector.shape_cast %375 : vector<1x1x8x129xf32> to vector<8x129xf32>
    %c0_235 = arith.constant 0 : index
    %c21_236 = arith.constant 21 : index
    %377 = memref.load %arg2[%c0_235, %c21_236] : memref<4x32xf32, #tpu.memory_space<smem>>
    %378 = vector.broadcast %377 : f32 to vector<8x129xf32>
    %379 = arith.mulf %376, %378 : vector<8x129xf32>
    %380 = arith.addf %362, %379 : vector<8x129xf32>
    %c1_237 = arith.constant 1 : index
    %c21_238 = arith.constant 21 : index
    %381 = memref.load %arg2[%c1_237, %c21_238] : memref<4x32xf32, #tpu.memory_space<smem>>
    %382 = vector.broadcast %381 : f32 to vector<8x129xf32>
    %383 = arith.mulf %376, %382 : vector<8x129xf32>
    %384 = arith.addf %366, %383 : vector<8x129xf32>
    %c2_239 = arith.constant 2 : index
    %c21_240 = arith.constant 21 : index
    %385 = memref.load %arg2[%c2_239, %c21_240] : memref<4x32xf32, #tpu.memory_space<smem>>
    %386 = vector.broadcast %385 : f32 to vector<8x129xf32>
    %387 = arith.mulf %376, %386 : vector<8x129xf32>
    %388 = arith.addf %370, %387 : vector<8x129xf32>
    %c3_241 = arith.constant 3 : index
    %c21_242 = arith.constant 21 : index
    %389 = memref.load %arg2[%c3_241, %c21_242] : memref<4x32xf32, #tpu.memory_space<smem>>
    %390 = vector.broadcast %389 : f32 to vector<8x129xf32>
    %391 = arith.mulf %376, %390 : vector<8x129xf32>
    %392 = arith.addf %374, %391 : vector<8x129xf32>
    %c0_243 = arith.constant 0 : index
    %c22 = arith.constant 22 : index
    %c0_244 = arith.constant 0 : index
    %c0_245 = arith.constant 0 : index
    %393 = vector.load %arg5[%c0_243, %c22, %c0_244, %c0_245] : memref<1x32x8x129xf32, #tpu.memory_space<vmem>>, vector<1x1x8x129xf32>
    %394 = vector.shape_cast %393 : vector<1x1x8x129xf32> to vector<8x129xf32>
    %c0_246 = arith.constant 0 : index
    %c22_247 = arith.constant 22 : index
    %395 = memref.load %arg2[%c0_246, %c22_247] : memref<4x32xf32, #tpu.memory_space<smem>>
    %396 = vector.broadcast %395 : f32 to vector<8x129xf32>
    %397 = arith.mulf %394, %396 : vector<8x129xf32>
    %398 = arith.addf %380, %397 : vector<8x129xf32>
    %c1_248 = arith.constant 1 : index
    %c22_249 = arith.constant 22 : index
    %399 = memref.load %arg2[%c1_248, %c22_249] : memref<4x32xf32, #tpu.memory_space<smem>>
    %400 = vector.broadcast %399 : f32 to vector<8x129xf32>
    %401 = arith.mulf %394, %400 : vector<8x129xf32>
    %402 = arith.addf %384, %401 : vector<8x129xf32>
    %c2_250 = arith.constant 2 : index
    %c22_251 = arith.constant 22 : index
    %403 = memref.load %arg2[%c2_250, %c22_251] : memref<4x32xf32, #tpu.memory_space<smem>>
    %404 = vector.broadcast %403 : f32 to vector<8x129xf32>
    %405 = arith.mulf %394, %404 : vector<8x129xf32>
    %406 = arith.addf %388, %405 : vector<8x129xf32>
    %c3_252 = arith.constant 3 : index
    %c22_253 = arith.constant 22 : index
    %407 = memref.load %arg2[%c3_252, %c22_253] : memref<4x32xf32, #tpu.memory_space<smem>>
    %408 = vector.broadcast %407 : f32 to vector<8x129xf32>
    %409 = arith.mulf %394, %408 : vector<8x129xf32>
    %410 = arith.addf %392, %409 : vector<8x129xf32>
    %c0_254 = arith.constant 0 : index
    %c23 = arith.constant 23 : index
    %c0_255 = arith.constant 0 : index
    %c0_256 = arith.constant 0 : index
    %411 = vector.load %arg5[%c0_254, %c23, %c0_255, %c0_256] : memref<1x32x8x129xf32, #tpu.memory_space<vmem>>, vector<1x1x8x129xf32>
    %412 = vector.shape_cast %411 : vector<1x1x8x129xf32> to vector<8x129xf32>
    %c0_257 = arith.constant 0 : index
    %c23_258 = arith.constant 23 : index
    %413 = memref.load %arg2[%c0_257, %c23_258] : memref<4x32xf32, #tpu.memory_space<smem>>
    %414 = vector.broadcast %413 : f32 to vector<8x129xf32>
    %415 = arith.mulf %412, %414 : vector<8x129xf32>
    %416 = arith.addf %398, %415 : vector<8x129xf32>
    %c1_259 = arith.constant 1 : index
    %c23_260 = arith.constant 23 : index
    %417 = memref.load %arg2[%c1_259, %c23_260] : memref<4x32xf32, #tpu.memory_space<smem>>
    %418 = vector.broadcast %417 : f32 to vector<8x129xf32>
    %419 = arith.mulf %412, %418 : vector<8x129xf32>
    %420 = arith.addf %402, %419 : vector<8x129xf32>
    %c2_261 = arith.constant 2 : index
    %c23_262 = arith.constant 23 : index
    %421 = memref.load %arg2[%c2_261, %c23_262] : memref<4x32xf32, #tpu.memory_space<smem>>
    %422 = vector.broadcast %421 : f32 to vector<8x129xf32>
    %423 = arith.mulf %412, %422 : vector<8x129xf32>
    %424 = arith.addf %406, %423 : vector<8x129xf32>
    %c3_263 = arith.constant 3 : index
    %c23_264 = arith.constant 23 : index
    %425 = memref.load %arg2[%c3_263, %c23_264] : memref<4x32xf32, #tpu.memory_space<smem>>
    %426 = vector.broadcast %425 : f32 to vector<8x129xf32>
    %427 = arith.mulf %412, %426 : vector<8x129xf32>
    %428 = arith.addf %410, %427 : vector<8x129xf32>
    %c0_265 = arith.constant 0 : index
    %c24 = arith.constant 24 : index
    %c0_266 = arith.constant 0 : index
    %c0_267 = arith.constant 0 : index
    %429 = vector.load %arg5[%c0_265, %c24, %c0_266, %c0_267] : memref<1x32x8x129xf32, #tpu.memory_space<vmem>>, vector<1x1x8x129xf32>
    %430 = vector.shape_cast %429 : vector<1x1x8x129xf32> to vector<8x129xf32>
    %c0_268 = arith.constant 0 : index
    %c24_269 = arith.constant 24 : index
    %431 = memref.load %arg2[%c0_268, %c24_269] : memref<4x32xf32, #tpu.memory_space<smem>>
    %432 = vector.broadcast %431 : f32 to vector<8x129xf32>
    %433 = arith.mulf %430, %432 : vector<8x129xf32>
    %434 = arith.addf %416, %433 : vector<8x129xf32>
    %c1_270 = arith.constant 1 : index
    %c24_271 = arith.constant 24 : index
    %435 = memref.load %arg2[%c1_270, %c24_271] : memref<4x32xf32, #tpu.memory_space<smem>>
    %436 = vector.broadcast %435 : f32 to vector<8x129xf32>
    %437 = arith.mulf %430, %436 : vector<8x129xf32>
    %438 = arith.addf %420, %437 : vector<8x129xf32>
    %c2_272 = arith.constant 2 : index
    %c24_273 = arith.constant 24 : index
    %439 = memref.load %arg2[%c2_272, %c24_273] : memref<4x32xf32, #tpu.memory_space<smem>>
    %440 = vector.broadcast %439 : f32 to vector<8x129xf32>
    %441 = arith.mulf %430, %440 : vector<8x129xf32>
    %442 = arith.addf %424, %441 : vector<8x129xf32>
    %c3_274 = arith.constant 3 : index
    %c24_275 = arith.constant 24 : index
    %443 = memref.load %arg2[%c3_274, %c24_275] : memref<4x32xf32, #tpu.memory_space<smem>>
    %444 = vector.broadcast %443 : f32 to vector<8x129xf32>
    %445 = arith.mulf %430, %444 : vector<8x129xf32>
    %446 = arith.addf %428, %445 : vector<8x129xf32>
    %c0_276 = arith.constant 0 : index
    %c25 = arith.constant 25 : index
    %c0_277 = arith.constant 0 : index
    %c0_278 = arith.constant 0 : index
    %447 = vector.load %arg5[%c0_276, %c25, %c0_277, %c0_278] : memref<1x32x8x129xf32, #tpu.memory_space<vmem>>, vector<1x1x8x129xf32>
    %448 = vector.shape_cast %447 : vector<1x1x8x129xf32> to vector<8x129xf32>
    %c0_279 = arith.constant 0 : index
    %c25_280 = arith.constant 25 : index
    %449 = memref.load %arg2[%c0_279, %c25_280] : memref<4x32xf32, #tpu.memory_space<smem>>
    %450 = vector.broadcast %449 : f32 to vector<8x129xf32>
    %451 = arith.mulf %448, %450 : vector<8x129xf32>
    %452 = arith.addf %434, %451 : vector<8x129xf32>
    %c1_281 = arith.constant 1 : index
    %c25_282 = arith.constant 25 : index
    %453 = memref.load %arg2[%c1_281, %c25_282] : memref<4x32xf32, #tpu.memory_space<smem>>
    %454 = vector.broadcast %453 : f32 to vector<8x129xf32>
    %455 = arith.mulf %448, %454 : vector<8x129xf32>
    %456 = arith.addf %438, %455 : vector<8x129xf32>
    %c2_283 = arith.constant 2 : index
    %c25_284 = arith.constant 25 : index
    %457 = memref.load %arg2[%c2_283, %c25_284] : memref<4x32xf32, #tpu.memory_space<smem>>
    %458 = vector.broadcast %457 : f32 to vector<8x129xf32>
    %459 = arith.mulf %448, %458 : vector<8x129xf32>
    %460 = arith.addf %442, %459 : vector<8x129xf32>
    %c3_285 = arith.constant 3 : index
    %c25_286 = arith.constant 25 : index
    %461 = memref.load %arg2[%c3_285, %c25_286] : memref<4x32xf32, #tpu.memory_space<smem>>
    %462 = vector.broadcast %461 : f32 to vector<8x129xf32>
    %463 = arith.mulf %448, %462 : vector<8x129xf32>
    %464 = arith.addf %446, %463 : vector<8x129xf32>
    %c0_287 = arith.constant 0 : index
    %c26 = arith.constant 26 : index
    %c0_288 = arith.constant 0 : index
    %c0_289 = arith.constant 0 : index
    %465 = vector.load %arg5[%c0_287, %c26, %c0_288, %c0_289] : memref<1x32x8x129xf32, #tpu.memory_space<vmem>>, vector<1x1x8x129xf32>
    %466 = vector.shape_cast %465 : vector<1x1x8x129xf32> to vector<8x129xf32>
    %c0_290 = arith.constant 0 : index
    %c26_291 = arith.constant 26 : index
    %467 = memref.load %arg2[%c0_290, %c26_291] : memref<4x32xf32, #tpu.memory_space<smem>>
    %468 = vector.broadcast %467 : f32 to vector<8x129xf32>
    %469 = arith.mulf %466, %468 : vector<8x129xf32>
    %470 = arith.addf %452, %469 : vector<8x129xf32>
    %c1_292 = arith.constant 1 : index
    %c26_293 = arith.constant 26 : index
    %471 = memref.load %arg2[%c1_292, %c26_293] : memref<4x32xf32, #tpu.memory_space<smem>>
    %472 = vector.broadcast %471 : f32 to vector<8x129xf32>
    %473 = arith.mulf %466, %472 : vector<8x129xf32>
    %474 = arith.addf %456, %473 : vector<8x129xf32>
    %c2_294 = arith.constant 2 : index
    %c26_295 = arith.constant 26 : index
    %475 = memref.load %arg2[%c2_294, %c26_295] : memref<4x32xf32, #tpu.memory_space<smem>>
    %476 = vector.broadcast %475 : f32 to vector<8x129xf32>
    %477 = arith.mulf %466, %476 : vector<8x129xf32>
    %478 = arith.addf %460, %477 : vector<8x129xf32>
    %c3_296 = arith.constant 3 : index
    %c26_297 = arith.constant 26 : index
    %479 = memref.load %arg2[%c3_296, %c26_297] : memref<4x32xf32, #tpu.memory_space<smem>>
    %480 = vector.broadcast %479 : f32 to vector<8x129xf32>
    %481 = arith.mulf %466, %480 : vector<8x129xf32>
    %482 = arith.addf %464, %481 : vector<8x129xf32>
    %c0_298 = arith.constant 0 : index
    %c27 = arith.constant 27 : index
    %c0_299 = arith.constant 0 : index
    %c0_300 = arith.constant 0 : index
    %483 = vector.load %arg5[%c0_298, %c27, %c0_299, %c0_300] : memref<1x32x8x129xf32, #tpu.memory_space<vmem>>, vector<1x1x8x129xf32>
    %484 = vector.shape_cast %483 : vector<1x1x8x129xf32> to vector<8x129xf32>
    %c0_301 = arith.constant 0 : index
    %c27_302 = arith.constant 27 : index
    %485 = memref.load %arg2[%c0_301, %c27_302] : memref<4x32xf32, #tpu.memory_space<smem>>
    %486 = vector.broadcast %485 : f32 to vector<8x129xf32>
    %487 = arith.mulf %484, %486 : vector<8x129xf32>
    %488 = arith.addf %470, %487 : vector<8x129xf32>
    %c1_303 = arith.constant 1 : index
    %c27_304 = arith.constant 27 : index
    %489 = memref.load %arg2[%c1_303, %c27_304] : memref<4x32xf32, #tpu.memory_space<smem>>
    %490 = vector.broadcast %489 : f32 to vector<8x129xf32>
    %491 = arith.mulf %484, %490 : vector<8x129xf32>
    %492 = arith.addf %474, %491 : vector<8x129xf32>
    %c2_305 = arith.constant 2 : index
    %c27_306 = arith.constant 27 : index
    %493 = memref.load %arg2[%c2_305, %c27_306] : memref<4x32xf32, #tpu.memory_space<smem>>
    %494 = vector.broadcast %493 : f32 to vector<8x129xf32>
    %495 = arith.mulf %484, %494 : vector<8x129xf32>
    %496 = arith.addf %478, %495 : vector<8x129xf32>
    %c3_307 = arith.constant 3 : index
    %c27_308 = arith.constant 27 : index
    %497 = memref.load %arg2[%c3_307, %c27_308] : memref<4x32xf32, #tpu.memory_space<smem>>
    %498 = vector.broadcast %497 : f32 to vector<8x129xf32>
    %499 = arith.mulf %484, %498 : vector<8x129xf32>
    %500 = arith.addf %482, %499 : vector<8x129xf32>
    %c0_309 = arith.constant 0 : index
    %c28 = arith.constant 28 : index
    %c0_310 = arith.constant 0 : index
    %c0_311 = arith.constant 0 : index
    %501 = vector.load %arg5[%c0_309, %c28, %c0_310, %c0_311] : memref<1x32x8x129xf32, #tpu.memory_space<vmem>>, vector<1x1x8x129xf32>
    %502 = vector.shape_cast %501 : vector<1x1x8x129xf32> to vector<8x129xf32>
    %c0_312 = arith.constant 0 : index
    %c28_313 = arith.constant 28 : index
    %503 = memref.load %arg2[%c0_312, %c28_313] : memref<4x32xf32, #tpu.memory_space<smem>>
    %504 = vector.broadcast %503 : f32 to vector<8x129xf32>
    %505 = arith.mulf %502, %504 : vector<8x129xf32>
    %506 = arith.addf %488, %505 : vector<8x129xf32>
    %c1_314 = arith.constant 1 : index
    %c28_315 = arith.constant 28 : index
    %507 = memref.load %arg2[%c1_314, %c28_315] : memref<4x32xf32, #tpu.memory_space<smem>>
    %508 = vector.broadcast %507 : f32 to vector<8x129xf32>
    %509 = arith.mulf %502, %508 : vector<8x129xf32>
    %510 = arith.addf %492, %509 : vector<8x129xf32>
    %c2_316 = arith.constant 2 : index
    %c28_317 = arith.constant 28 : index
    %511 = memref.load %arg2[%c2_316, %c28_317] : memref<4x32xf32, #tpu.memory_space<smem>>
    %512 = vector.broadcast %511 : f32 to vector<8x129xf32>
    %513 = arith.mulf %502, %512 : vector<8x129xf32>
    %514 = arith.addf %496, %513 : vector<8x129xf32>
    %c3_318 = arith.constant 3 : index
    %c28_319 = arith.constant 28 : index
    %515 = memref.load %arg2[%c3_318, %c28_319] : memref<4x32xf32, #tpu.memory_space<smem>>
    %516 = vector.broadcast %515 : f32 to vector<8x129xf32>
    %517 = arith.mulf %502, %516 : vector<8x129xf32>
    %518 = arith.addf %500, %517 : vector<8x129xf32>
    %c0_320 = arith.constant 0 : index
    %c29 = arith.constant 29 : index
    %c0_321 = arith.constant 0 : index
    %c0_322 = arith.constant 0 : index
    %519 = vector.load %arg5[%c0_320, %c29, %c0_321, %c0_322] : memref<1x32x8x129xf32, #tpu.memory_space<vmem>>, vector<1x1x8x129xf32>
    %520 = vector.shape_cast %519 : vector<1x1x8x129xf32> to vector<8x129xf32>
    %c0_323 = arith.constant 0 : index
    %c29_324 = arith.constant 29 : index
    %521 = memref.load %arg2[%c0_323, %c29_324] : memref<4x32xf32, #tpu.memory_space<smem>>
    %522 = vector.broadcast %521 : f32 to vector<8x129xf32>
    %523 = arith.mulf %520, %522 : vector<8x129xf32>
    %524 = arith.addf %506, %523 : vector<8x129xf32>
    %c1_325 = arith.constant 1 : index
    %c29_326 = arith.constant 29 : index
    %525 = memref.load %arg2[%c1_325, %c29_326] : memref<4x32xf32, #tpu.memory_space<smem>>
    %526 = vector.broadcast %525 : f32 to vector<8x129xf32>
    %527 = arith.mulf %520, %526 : vector<8x129xf32>
    %528 = arith.addf %510, %527 : vector<8x129xf32>
    %c2_327 = arith.constant 2 : index
    %c29_328 = arith.constant 29 : index
    %529 = memref.load %arg2[%c2_327, %c29_328] : memref<4x32xf32, #tpu.memory_space<smem>>
    %530 = vector.broadcast %529 : f32 to vector<8x129xf32>
    %531 = arith.mulf %520, %530 : vector<8x129xf32>
    %532 = arith.addf %514, %531 : vector<8x129xf32>
    %c3_329 = arith.constant 3 : index
    %c29_330 = arith.constant 29 : index
    %533 = memref.load %arg2[%c3_329, %c29_330] : memref<4x32xf32, #tpu.memory_space<smem>>
    %534 = vector.broadcast %533 : f32 to vector<8x129xf32>
    %535 = arith.mulf %520, %534 : vector<8x129xf32>
    %536 = arith.addf %518, %535 : vector<8x129xf32>
    %c0_331 = arith.constant 0 : index
    %c30 = arith.constant 30 : index
    %c0_332 = arith.constant 0 : index
    %c0_333 = arith.constant 0 : index
    %537 = vector.load %arg5[%c0_331, %c30, %c0_332, %c0_333] : memref<1x32x8x129xf32, #tpu.memory_space<vmem>>, vector<1x1x8x129xf32>
    %538 = vector.shape_cast %537 : vector<1x1x8x129xf32> to vector<8x129xf32>
    %c0_334 = arith.constant 0 : index
    %c30_335 = arith.constant 30 : index
    %539 = memref.load %arg2[%c0_334, %c30_335] : memref<4x32xf32, #tpu.memory_space<smem>>
    %540 = vector.broadcast %539 : f32 to vector<8x129xf32>
    %541 = arith.mulf %538, %540 : vector<8x129xf32>
    %542 = arith.addf %524, %541 : vector<8x129xf32>
    %c1_336 = arith.constant 1 : index
    %c30_337 = arith.constant 30 : index
    %543 = memref.load %arg2[%c1_336, %c30_337] : memref<4x32xf32, #tpu.memory_space<smem>>
    %544 = vector.broadcast %543 : f32 to vector<8x129xf32>
    %545 = arith.mulf %538, %544 : vector<8x129xf32>
    %546 = arith.addf %528, %545 : vector<8x129xf32>
    %c2_338 = arith.constant 2 : index
    %c30_339 = arith.constant 30 : index
    %547 = memref.load %arg2[%c2_338, %c30_339] : memref<4x32xf32, #tpu.memory_space<smem>>
    %548 = vector.broadcast %547 : f32 to vector<8x129xf32>
    %549 = arith.mulf %538, %548 : vector<8x129xf32>
    %550 = arith.addf %532, %549 : vector<8x129xf32>
    %c3_340 = arith.constant 3 : index
    %c30_341 = arith.constant 30 : index
    %551 = memref.load %arg2[%c3_340, %c30_341] : memref<4x32xf32, #tpu.memory_space<smem>>
    %552 = vector.broadcast %551 : f32 to vector<8x129xf32>
    %553 = arith.mulf %538, %552 : vector<8x129xf32>
    %554 = arith.addf %536, %553 : vector<8x129xf32>
    %c0_342 = arith.constant 0 : index
    %c31 = arith.constant 31 : index
    %c0_343 = arith.constant 0 : index
    %c0_344 = arith.constant 0 : index
    %555 = vector.load %arg5[%c0_342, %c31, %c0_343, %c0_344] : memref<1x32x8x129xf32, #tpu.memory_space<vmem>>, vector<1x1x8x129xf32>
    %556 = vector.shape_cast %555 : vector<1x1x8x129xf32> to vector<8x129xf32>
    %c0_345 = arith.constant 0 : index
    %c31_346 = arith.constant 31 : index
    %557 = memref.load %arg2[%c0_345, %c31_346] : memref<4x32xf32, #tpu.memory_space<smem>>
    %558 = vector.broadcast %557 : f32 to vector<8x129xf32>
    %559 = arith.mulf %556, %558 : vector<8x129xf32>
    %560 = arith.addf %542, %559 : vector<8x129xf32>
    %c1_347 = arith.constant 1 : index
    %c31_348 = arith.constant 31 : index
    %561 = memref.load %arg2[%c1_347, %c31_348] : memref<4x32xf32, #tpu.memory_space<smem>>
    %562 = vector.broadcast %561 : f32 to vector<8x129xf32>
    %563 = arith.mulf %556, %562 : vector<8x129xf32>
    %564 = arith.addf %546, %563 : vector<8x129xf32>
    %c2_349 = arith.constant 2 : index
    %c31_350 = arith.constant 31 : index
    %565 = memref.load %arg2[%c2_349, %c31_350] : memref<4x32xf32, #tpu.memory_space<smem>>
    %566 = vector.broadcast %565 : f32 to vector<8x129xf32>
    %567 = arith.mulf %556, %566 : vector<8x129xf32>
    %568 = arith.addf %550, %567 : vector<8x129xf32>
    %c3_351 = arith.constant 3 : index
    %c31_352 = arith.constant 31 : index
    %569 = memref.load %arg2[%c3_351, %c31_352] : memref<4x32xf32, #tpu.memory_space<smem>>
    %570 = vector.broadcast %569 : f32 to vector<8x129xf32>
    %571 = arith.mulf %556, %570 : vector<8x129xf32>
    %572 = arith.addf %554, %571 : vector<8x129xf32>
    %c0_353 = arith.constant 0 : index
    %573 = memref.load %arg3[%c0_353] : memref<4xf32, #tpu.memory_space<smem>>
    %574 = vector.broadcast %573 : f32 to vector<8x129xf32>
    %575 = arith.addf %560, %574 : vector<8x129xf32>
    %cst = arith.constant 0.000000e+00 : f32
    %576 = vector.broadcast %cst : f32 to vector<8x129xf32>
    %577 = arith.cmpf oge, %575, %576 : vector<8x129xf32>
    %578 = vector.broadcast %0 : f32 to vector<8x129xf32>
    %579 = arith.mulf %578, %575 : vector<8x129xf32>
    %580 = arith.select %577, %575, %579 : vector<8x129xi1>, vector<8x129xf32>
    %cst_354 = arith.constant dense<0.000000e+00> : vector<8xf32>
    %581 = vector.multi_reduction <add>, %580, %cst_354 [1] : vector<8x129xf32> to vector<8xf32>
    %582 = vector.shape_cast %581 : vector<8xf32> to vector<8x1xf32>
    %c1_355 = arith.constant 1 : index
    %583 = memref.load %arg3[%c1_355] : memref<4xf32, #tpu.memory_space<smem>>
    %584 = vector.broadcast %583 : f32 to vector<8x129xf32>
    %585 = arith.addf %564, %584 : vector<8x129xf32>
    %cst_356 = arith.constant 0.000000e+00 : f32
    %586 = vector.broadcast %cst_356 : f32 to vector<8x129xf32>
    %587 = arith.cmpf oge, %585, %586 : vector<8x129xf32>
    %588 = vector.broadcast %0 : f32 to vector<8x129xf32>
    %589 = arith.mulf %588, %585 : vector<8x129xf32>
    %590 = arith.select %587, %585, %589 : vector<8x129xi1>, vector<8x129xf32>
    %cst_357 = arith.constant dense<0.000000e+00> : vector<8xf32>
    %591 = vector.multi_reduction <add>, %590, %cst_357 [1] : vector<8x129xf32> to vector<8xf32>
    %592 = vector.shape_cast %591 : vector<8xf32> to vector<8x1xf32>
    %593 = arith.addf %582, %592 : vector<8x1xf32>
    %c2_358 = arith.constant 2 : index
    %594 = memref.load %arg3[%c2_358] : memref<4xf32, #tpu.memory_space<smem>>
    %595 = vector.broadcast %594 : f32 to vector<8x129xf32>
    %596 = arith.addf %568, %595 : vector<8x129xf32>
    %cst_359 = arith.constant 0.000000e+00 : f32
    %597 = vector.broadcast %cst_359 : f32 to vector<8x129xf32>
    %598 = arith.cmpf oge, %596, %597 : vector<8x129xf32>
    %599 = vector.broadcast %0 : f32 to vector<8x129xf32>
    %600 = arith.mulf %599, %596 : vector<8x129xf32>
    %601 = arith.select %598, %596, %600 : vector<8x129xi1>, vector<8x129xf32>
    %cst_360 = arith.constant dense<0.000000e+00> : vector<8xf32>
    %602 = vector.multi_reduction <add>, %601, %cst_360 [1] : vector<8x129xf32> to vector<8xf32>
    %603 = vector.shape_cast %602 : vector<8xf32> to vector<8x1xf32>
    %604 = arith.addf %593, %603 : vector<8x1xf32>
    %c3_361 = arith.constant 3 : index
    %605 = memref.load %arg3[%c3_361] : memref<4xf32, #tpu.memory_space<smem>>
    %606 = vector.broadcast %605 : f32 to vector<8x129xf32>
    %607 = arith.addf %572, %606 : vector<8x129xf32>
    %cst_362 = arith.constant 0.000000e+00 : f32
    %608 = vector.broadcast %cst_362 : f32 to vector<8x129xf32>
    %609 = arith.cmpf oge, %607, %608 : vector<8x129xf32>
    %610 = vector.broadcast %0 : f32 to vector<8x129xf32>
    %611 = arith.mulf %610, %607 : vector<8x129xf32>
    %612 = arith.select %609, %607, %611 : vector<8x129xi1>, vector<8x129xf32>
    %cst_363 = arith.constant dense<0.000000e+00> : vector<8xf32>
    %613 = vector.multi_reduction <add>, %612, %cst_363 [1] : vector<8x129xf32> to vector<8xf32>
    %614 = vector.shape_cast %613 : vector<8xf32> to vector<8x1xf32>
    %615 = arith.addf %604, %614 : vector<8x1xf32>
    %cst_364 = arith.constant 0.00193798449 : f32
    %616 = vector.broadcast %cst_364 : f32 to vector<8x1xf32>
    %617 = arith.mulf %615, %616 : vector<8x1xf32>
    %618 = vector.broadcast %617 : vector<8x1xf32> to vector<8x129xf32>
    %619 = arith.subf %580, %618 : vector<8x129xf32>
    %620 = arith.mulf %619, %619 : vector<8x129xf32>
    %cst_365 = arith.constant dense<0.000000e+00> : vector<8xf32>
    %621 = vector.multi_reduction <add>, %620, %cst_365 [1] : vector<8x129xf32> to vector<8xf32>
    %622 = vector.shape_cast %621 : vector<8xf32> to vector<8x1xf32>
    %623 = vector.broadcast %617 : vector<8x1xf32> to vector<8x129xf32>
    %624 = arith.subf %590, %623 : vector<8x129xf32>
    %625 = arith.mulf %624, %624 : vector<8x129xf32>
    %cst_366 = arith.constant dense<0.000000e+00> : vector<8xf32>
    %626 = vector.multi_reduction <add>, %625, %cst_366 [1] : vector<8x129xf32> to vector<8xf32>
    %627 = vector.shape_cast %626 : vector<8xf32> to vector<8x1xf32>
    %628 = arith.addf %622, %627 : vector<8x1xf32>
    %629 = vector.broadcast %617 : vector<8x1xf32> to vector<8x129xf32>
    %630 = arith.subf %601, %629 : vector<8x129xf32>
    %631 = arith.mulf %630, %630 : vector<8x129xf32>
    %cst_367 = arith.constant dense<0.000000e+00> : vector<8xf32>
    %632 = vector.multi_reduction <add>, %631, %cst_367 [1] : vector<8x129xf32> to vector<8xf32>
    %633 = vector.shape_cast %632 : vector<8xf32> to vector<8x1xf32>
    %634 = arith.addf %628, %633 : vector<8x1xf32>
    %635 = vector.broadcast %617 : vector<8x1xf32> to vector<8x129xf32>
    %636 = arith.subf %612, %635 : vector<8x129xf32>
    %637 = arith.mulf %636, %636 : vector<8x129xf32>
    %cst_368 = arith.constant dense<0.000000e+00> : vector<8xf32>
    %638 = vector.multi_reduction <add>, %637, %cst_368 [1] : vector<8x129xf32> to vector<8xf32>
    %639 = vector.shape_cast %638 : vector<8xf32> to vector<8x1xf32>
    %640 = arith.addf %634, %639 : vector<8x1xf32>
    %cst_369 = arith.constant 0.00193798449 : f32
    %641 = vector.broadcast %cst_369 : f32 to vector<8x1xf32>
    %642 = arith.mulf %640, %641 : vector<8x1xf32>
    %cst_370 = arith.constant 9.99999974E-6 : f32
    %643 = vector.broadcast %cst_370 : f32 to vector<8x1xf32>
    %644 = arith.addf %642, %643 : vector<8x1xf32>
    %645 = math.rsqrt %644 : vector<8x1xf32>
    %c0_371 = arith.constant 0 : index
    %c0_372 = arith.constant 0 : index
    %646 = vector.load %arg6[%c0_371, %c0_372] : memref<4x129xf32, #tpu.memory_space<vmem>>, vector<1x129xf32>
    %c0_373 = arith.constant 0 : index
    %c0_374 = arith.constant 0 : index
    %647 = vector.load %arg7[%c0_373, %c0_374] : memref<4x129xf32, #tpu.memory_space<vmem>>, vector<1x129xf32>
    %648 = vector.broadcast %645 : vector<8x1xf32> to vector<8x129xf32>
    %649 = arith.mulf %619, %648 : vector<8x129xf32>
    %650 = vector.broadcast %646 : vector<1x129xf32> to vector<8x129xf32>
    %651 = arith.mulf %649, %650 : vector<8x129xf32>
    %652 = vector.broadcast %647 : vector<1x129xf32> to vector<8x129xf32>
    %653 = arith.addf %651, %652 : vector<8x129xf32>
    %c0_375 = arith.constant 0 : index
    %c0_376 = arith.constant 0 : index
    %c0_377 = arith.constant 0 : index
    %c0_378 = arith.constant 0 : index
    %654 = vector.load %arg8[%c0_375, %c0_376, %c0_377, %c0_378] : memref<1x4x8x129xf32, #tpu.memory_space<vmem>>, vector<1x1x8x129xf32>
    %655 = vector.shape_cast %654 : vector<1x1x8x129xf32> to vector<8x129xf32>
    %656 = vector.shape_cast %653 : vector<8x129xf32> to vector<1x1x8x129xf32>
    tpu.vector_store %arg8[%c0_375, %c0_376, %c0_377, %c0_378], %656 {strides = array<i32>} : memref<1x4x8x129xf32, #tpu.memory_space<vmem>>, vector<1x1x8x129xf32>,
    %c1_379 = arith.constant 1 : index
    %c0_380 = arith.constant 0 : index
    %657 = vector.load %arg6[%c1_379, %c0_380] : memref<4x129xf32, #tpu.memory_space<vmem>>, vector<1x129xf32>
    %c1_381 = arith.constant 1 : index
    %c0_382 = arith.constant 0 : index
    %658 = vector.load %arg7[%c1_381, %c0_382] : memref<4x129xf32, #tpu.memory_space<vmem>>, vector<1x129xf32>
    %659 = vector.broadcast %645 : vector<8x1xf32> to vector<8x129xf32>
    %660 = arith.mulf %624, %659 : vector<8x129xf32>
    %661 = vector.broadcast %657 : vector<1x129xf32> to vector<8x129xf32>
    %662 = arith.mulf %660, %661 : vector<8x129xf32>
    %663 = vector.broadcast %658 : vector<1x129xf32> to vector<8x129xf32>
    %664 = arith.addf %662, %663 : vector<8x129xf32>
    %c0_383 = arith.constant 0 : index
    %c1_384 = arith.constant 1 : index
    %c0_385 = arith.constant 0 : index
    %c0_386 = arith.constant 0 : index
    %665 = vector.load %arg8[%c0_383, %c1_384, %c0_385, %c0_386] : memref<1x4x8x129xf32, #tpu.memory_space<vmem>>, vector<1x1x8x129xf32>
    %666 = vector.shape_cast %665 : vector<1x1x8x129xf32> to vector<8x129xf32>
    %667 = vector.shape_cast %664 : vector<8x129xf32> to vector<1x1x8x129xf32>
    tpu.vector_store %arg8[%c0_383, %c1_384, %c0_385, %c0_386], %667 {strides = array<i32>} : memref<1x4x8x129xf32, #tpu.memory_space<vmem>>, vector<1x1x8x129xf32>,
    %c2_387 = arith.constant 2 : index
    %c0_388 = arith.constant 0 : index
    %668 = vector.load %arg6[%c2_387, %c0_388] : memref<4x129xf32, #tpu.memory_space<vmem>>, vector<1x129xf32>
    %c2_389 = arith.constant 2 : index
    %c0_390 = arith.constant 0 : index
    %669 = vector.load %arg7[%c2_389, %c0_390] : memref<4x129xf32, #tpu.memory_space<vmem>>, vector<1x129xf32>
    %670 = vector.broadcast %645 : vector<8x1xf32> to vector<8x129xf32>
    %671 = arith.mulf %630, %670 : vector<8x129xf32>
    %672 = vector.broadcast %668 : vector<1x129xf32> to vector<8x129xf32>
    %673 = arith.mulf %671, %672 : vector<8x129xf32>
    %674 = vector.broadcast %669 : vector<1x129xf32> to vector<8x129xf32>
    %675 = arith.addf %673, %674 : vector<8x129xf32>
    %c0_391 = arith.constant 0 : index
    %c2_392 = arith.constant 2 : index
    %c0_393 = arith.constant 0 : index
    %c0_394 = arith.constant 0 : index
    %676 = vector.load %arg8[%c0_391, %c2_392, %c0_393, %c0_394] : memref<1x4x8x129xf32, #tpu.memory_space<vmem>>, vector<1x1x8x129xf32>
    %677 = vector.shape_cast %676 : vector<1x1x8x129xf32> to vector<8x129xf32>
    %678 = vector.shape_cast %675 : vector<8x129xf32> to vector<1x1x8x129xf32>
    tpu.vector_store %arg8[%c0_391, %c2_392, %c0_393, %c0_394], %678 {strides = array<i32>} : memref<1x4x8x129xf32, #tpu.memory_space<vmem>>, vector<1x1x8x129xf32>,
    %c3_395 = arith.constant 3 : index
    %c0_396 = arith.constant 0 : index
    %679 = vector.load %arg6[%c3_395, %c0_396] : memref<4x129xf32, #tpu.memory_space<vmem>>, vector<1x129xf32>
    %c3_397 = arith.constant 3 : index
    %c0_398 = arith.constant 0 : index
    %680 = vector.load %arg7[%c3_397, %c0_398] : memref<4x129xf32, #tpu.memory_space<vmem>>, vector<1x129xf32>
    %681 = vector.broadcast %645 : vector<8x1xf32> to vector<8x129xf32>
    %682 = arith.mulf %636, %681 : vector<8x129xf32>
    %683 = vector.broadcast %679 : vector<1x129xf32> to vector<8x129xf32>
    %684 = arith.mulf %682, %683 : vector<8x129xf32>
    %685 = vector.broadcast %680 : vector<1x129xf32> to vector<8x129xf32>
    %686 = arith.addf %684, %685 : vector<8x129xf32>
    %c0_399 = arith.constant 0 : index
    %c3_400 = arith.constant 3 : index
    %c0_401 = arith.constant 0 : index
    %c0_402 = arith.constant 0 : index
    %687 = vector.load %arg8[%c0_399, %c3_400, %c0_401, %c0_402] : memref<1x4x8x129xf32, #tpu.memory_space<vmem>>, vector<1x1x8x129xf32>
    %688 = vector.shape_cast %687 : vector<1x1x8x129xf32> to vector<8x129xf32>
    %689 = vector.shape_cast %686 : vector<8x129xf32> to vector<1x1x8x129xf32>
    tpu.vector_store %arg8[%c0_399, %c3_400, %c0_401, %c0_402], %689 {strides = array<i32>} : memref<1x4x8x129xf32, #tpu.memory_space<vmem>>, vector<1x1x8x129xf32>,
    return
  }
  func.func @transform_0(%arg0: i32, %arg1: i32) -> (i32, i32) {
    %c0_i32 = arith.constant 0 : i32
    %c0_i32_0 = arith.constant 0 : i32
    %c0_i32_1 = arith.constant 0 : i32
    return %c0_i32, %c0_i32_0 : i32, i32
  }
  func.func @transform_1(%arg0: i32, %arg1: i32) -> i32 {
    %c0_i32 = arith.constant 0 : i32
    %c0_i32_0 = arith.constant 0 : i32
    return %c0_i32 : i32
  }
  func.func @transform_2(%arg0: i32, %arg1: i32) -> i32 {
    %c0_i32 = arith.constant 0 : i32
    %c0_i32_0 = arith.constant 0 : i32
    return %c0_i32 : i32
  }
  func.func @transform_3(%arg0: i32, %arg1: i32) -> (i32, i32, i32, i32) {
    %c0_i32 = arith.constant 0 : i32
    %c0_i32_0 = arith.constant 0 : i32
    %c0_i32_1 = arith.constant 0 : i32
    return %arg0, %c0_i32, %arg1, %c0_i32_0 : i32, i32, i32, i32
  }
  func.func @transform_4(%arg0: i32, %arg1: i32) -> (i32, i32) {
    %c0_i32 = arith.constant 0 : i32
    %c0_i32_0 = arith.constant 0 : i32
    %c0_i32_1 = arith.constant 0 : i32
    return %c0_i32, %c0_i32_0 : i32, i32
  }
  func.func @transform_5(%arg0: i32, %arg1: i32) -> (i32, i32) {
    %c0_i32 = arith.constant 0 : i32
    %c0_i32_0 = arith.constant 0 : i32
    %c0_i32_1 = arith.constant 0 : i32
    return %c0_i32, %c0_i32_0 : i32, i32
  }
  func.func @transform_6(%arg0: i32, %arg1: i32) -> (i32, i32, i32, i32) {
    %c0_i32 = arith.constant 0 : i32
    %c0_i32_0 = arith.constant 0 : i32
    %c0_i32_1 = arith.constant 0 : i32
    return %arg0, %c0_i32, %arg1, %c0_i32_0 : i32, i32, i32, i32
  }
}

</mosaic_0001>

<llo_original>
// kernel: generator_forward.1
$region0: #{generator_forward.1}
  #allocation0 [shape = 'u32[]', space=smem, size = 0x4, offset = 0x4, fixed_abs, tag = 'smem constant byte address 0x4 - core index']
  #allocation1 [shape = 'u32[144,128]{1,0:T(1,128)}', space=vmem, size = 0x12000, scoped, tag = 'internal scratch']
  #allocation2 [shape = 'f32[1]{0:T(128)S(6)}', space=smem, size = 0x200, scoped, tag = 'scoped memory for generator_forward.1']
  %s0 = inlined_call_operand.hbm [shape: f32[4,32], index: 0, kind: input, shape index: {}]
  %s1 = inlined_call_operand.vmem [shape: f32[4], index: 1, kind: input, shape index: {}]
  %s2 = inlined_call_operand.<no memory space> [shape: f32[1], index: 2, kind: input, shape index: {}]
  %s3 = inlined_call_operand.hbm [shape: f32[2,32,8,129], index: 3, kind: input, shape index: {}]
  %s4 = inlined_call_operand.vmem [shape: f32[4,129], index: 4, kind: input, shape index: {}]
  %s5 = inlined_call_operand.hbm [shape: f32[4,129], index: 5, kind: input, shape index: {}]
  %s6 = inlined_call_operand.hbm [shape: f32[2,4,8,129], index: 6, kind: output, shape index: {}]
  %s7 = sld [smem:[#allocation0]]
  $region73: #{generator_forward.1} parent=0
    _
  %s9 = ssub.s32 1, %s7
  %s10 = scalar_select 0, %s9, %s7
  %11 = sst [smem:[#allocation2]] %s2
  $region1: #{generator_forward.1} parent=0
    #allocation3 [shape = 'u8[2048]{0}', space=smem, size = 0x800, scoped, tag = 'input window, operand 0, single buffered']
    #allocation4 [shape = 's32[2]{0}', space=sflag, size = 0x8, scoped, tag = 'scoped memory for generator_forward.1']
    #allocation5 [shape = 's32[2]{0}', space=sflag, size = 0x8, scoped, tag = 'scoped memory for generator_forward.1']
    #allocation6 [shape = 's32[2]{0}', space=sflag, size = 0x8, scoped, tag = 'scoped memory for generator_forward.1']
    #allocation7 [shape = 's32[2]{0}', space=sflag, size = 0x8, scoped, tag = 'scoped memory for generator_forward.1']
    #allocation8 [shape = 'u8[512]{0}', space=smem, size = 0x200, scoped, tag = 'input window, operand 1, single buffered']
    #allocation9 [shape = 'u8[524288]{0}', space=vmem, size = 0x80000, scoped, tag = 'input window, operand 3']
    #allocation10 [shape = 'u8[4096]{0}', space=vmem, size = 0x1000, scoped, tag = 'input window, operand 5, single buffered']
    #allocation11 [shape = 's32[1]{0}', space=sflag, size = 0x4, scoped, tag = 'scoped memory for generator_forward.1']
    #allocation12 [shape = 'u8[65536]{0}', space=vmem, size = 0x10000, scoped, tag = 'output window, operand 0']
    %12 = vsyncpa [#allocation6], 0
    %13 = vsyncpa [#allocation7], 0
    %14 = vsyncpa [#allocation4], 0
    %s15 = scalar_lea.sflag [#allocation4], 1
    %16 = vsyncpa %s15, 0
    %17 = vsyncpa [#allocation11], 0
    %18 = vsyncpa [#allocation5], 0
    %s19 = scalar_lea.sflag [#allocation5], 1
    %20 = vsyncpa %s19, 0
    loop: start=0, step=1, limit=4
    $region2: #{generator_forward.1} parent=1 // loop_pre_header
      _
    $region3: #{generator_forward.1} parent=1 // loop_header
      %s22 = sphi 0, %s26
      %p23 = scmp.ge.s32.totalorder %s22, 4
      %s29 = sphi 0, %s41
      %s30 = sphi 0, %s37
      %s31 = sphi 0, %s29
      %s32 = sphi 0, %s30
      %s33 = sphi 0, %s31
      %s34 = sphi 0, %s32
      %s42 = sphi 0, %s42
      %s44 = sphi 0, %s42
      %s45 = sphi 0, %s44
      %s59 = sphi 0, %s45
      %s63 = sphi 0, %s63
      %s65 = sphi 0, %s63
      %s66 = sphi 0, %s65
      %s80 = sphi 0, %s66
      %s84 = sphi 0, %s84
      %s86 = sphi 0, %s84
      %s87 = sphi 0, %s86
      %s101 = sphi 0, %s87
      %s109 = sphi 0, %s111
      %s112 = sphi 0, %s109
      %s113 = sphi 0, %s112
      %s129 = sphi 0, %s113
      %s133 = sphi 0, %s133
      %s135 = sphi 0, %s133
      %s136 = sphi 0, %s135
      %s150 = sphi 0, %s136
      %s154 = sphi 0, %s154
      %s156 = sphi 0, %s154
      %s157 = sphi 0, %s156
      %s171 = sphi 0, %s157
      %s179 = sphi 0, %s181
      %s182 = sphi 0, %s179
      %s183 = sphi 0, %s182
      %s199 = sphi 0, %s183
    $region4: #{generator_forward.1} parent=1 // loop_header_branch
      %25 = sbr.rel (%p23) target = $region8
    $region5: #{generator_forward.1} parent=1 // loop_body
      %s27 = ssub.s32 %s22, 1
      %s28 = ssub.s32 %s22, 2
      %s35 = sadd.s32 1, %s30
      %p36 = scmp.ge.s32.totalorder %s35, 1
      %s37 = scalar_select %p36, 0, %s35
      %s38 = sadd.s32 1, %s29
      %s39 = scalar_select %p36, %s38, %s29
      %p40 = scmp.ge.s32.totalorder %s39, 2
      %s41 = scalar_select %p40, 0, %s39
      %s43 = sadd.s32 %s42, 1
      %p46 = scmp.eq.s32.totalorder %s22, 1
      %p47 = scmp.ne.s32.totalorder %s42, %s44
      %p48 = scmp.eq.s32.totalorder %s22, 0
      %p49 = por %p47, %p48
      %p50 = scmp.ne.s32.totalorder %s42, %s44
      %p51 = scmp.eq.s32.totalorder %s27, 1
      %p52 = por %p50, %p51
      %p53 = scmp.ne.s32.totalorder %s44, %s45
      %p54 = scmp.eq.s32.totalorder %s27, 0
      %p55 = por %p53, %p54
      %p56 = scmp.ne.s32.totalorder %s44, %s45
      %p57 = scmp.eq.s32.totalorder %s28, 1
      %p58 = por %p56, %p57
      %p60 = scmp.ne.s32.totalorder %s45, %s59
      %p61 = scmp.eq.s32.totalorder %s28, 0
      %p62 = por %p60, %p61
      %s64 = sadd.s32 %s63, 1
      %p67 = scmp.eq.s32.totalorder %s22, 1
      %p68 = scmp.ne.s32.totalorder %s63, %s65
      %p69 = scmp.eq.s32.totalorder %s22, 0
      %p70 = por %p68, %p69
      %p71 = scmp.ne.s32.totalorder %s63, %s65
      %p72 = scmp.eq.s32.totalorder %s27, 1
      %p73 = por %p71, %p72
      %p74 = scmp.ne.s32.totalorder %s65, %s66
      %p75 = scmp.eq.s32.totalorder %s27, 0
      %p76 = por %p74, %p75
      %p77 = scmp.ne.s32.totalorder %s65, %s66
      %p78 = scmp.eq.s32.totalorder %s28, 1
      %p79 = por %p77, %p78
      %p81 = scmp.ne.s32.totalorder %s66, %s80
      %p82 = scmp.eq.s32.totalorder %s28, 0
      %p83 = por %p81, %p82
      %s85 = sadd.s32 %s84, 1
      %p88 = scmp.eq.s32.totalorder %s22, 1
      %p89 = scmp.ne.s32.totalorder %s84, %s86
      %p90 = scmp.eq.s32.totalorder %s22, 0
      %p91 = por %p89, %p90
      %p92 = scmp.ne.s32.totalorder %s84, %s86
      %p93 = scmp.eq.s32.totalorder %s27, 1
      %p94 = por %p92, %p93
      %p95 = scmp.ne.s32.totalorder %s86, %s87
      %p96 = scmp.eq.s32.totalorder %s27, 0
      %p97 = por %p95, %p96
      %p98 = scmp.ne.s32.totalorder %s86, %s87
      %p99 = scmp.eq.s32.totalorder %s28, 1
      %p100 = por %p98, %p99
      %p102 = scmp.ne.s32.totalorder %s87, %s101
      %p103 = scmp.eq.s32.totalorder %s28, 0
      %p104 = por %p102, %p103
      %s105 = ssub.s32 %s29, %s41
      %s106 = ssub.s32 %s30, %s37
      %s107 = sor.u32 %s105, %s106
      %p108 = scmp.eq.s32.totalorder %s107, 0
      %s110 = sadd.s32 %s109, 1
      %s111 = scalar_select %p108, %s109, %s110
      %p114 = pneg %p108
      %p115 = scmp.eq.s32.totalorder %s22, 1
      %p116 = por %p114, %p115
      %p117 = scmp.ne.s32.totalorder %s109, %s112
      %p118 = scmp.eq.s32.totalorder %s22, 0
      %p119 = por %p117, %p118
      %p120 = scmp.ne.s32.totalorder %s109, %s112
      %p121 = scmp.eq.s32.totalorder %s27, 1
      %p122 = por %p120, %p121
      %p123 = scmp.ne.s32.totalorder %s112, %s113
      %p124 = scmp.eq.s32.totalorder %s27, 0
      %p125 = por %p123, %p124
      %p126 = scmp.ne.s32.totalorder %s112, %s113
      %p127 = scmp.eq.s32.totalorder %s28, 1
      %p128 = por %p126, %p127
      %p130 = scmp.ne.s32.totalorder %s113, %s129
      %p131 = scmp.eq.s32.totalorder %s28, 0
      %p132 = por %p130, %p131
      %s134 = sadd.s32 %s133, 1
      %p137 = scmp.eq.s32.totalorder %s22, 1
      %p138 = scmp.ne.s32.totalorder %s133, %s135
      %p139 = scmp.eq.s32.totalorder %s22, 0
      %p140 = por %p138, %p139
      %p141 = scmp.ne.s32.totalorder %s133, %s135
      %p142 = scmp.eq.s32.totalorder %s27, 1
      %p143 = por %p141, %p142
      %p144 = scmp.ne.s32.totalorder %s135, %s136
      %p145 = scmp.eq.s32.totalorder %s27, 0
      %p146 = por %p144, %p145
      %p147 = scmp.ne.s32.totalorder %s135, %s136
      %p148 = scmp.eq.s32.totalorder %s28, 1
      %p149 = por %p147, %p148
      %p151 = scmp.ne.s32.totalorder %s136, %s150
      %p152 = scmp.eq.s32.totalorder %s28, 0
      %p153 = por %p151, %p152
      %s155 = sadd.s32 %s154, 1
      %p158 = scmp.eq.s32.totalorder %s22, 1
      %p159 = scmp.ne.s32.totalorder %s154, %s156
      %p160 = scmp.eq.s32.totalorder %s22, 0
      %p161 = por %p159, %p160
      %p162 = scmp.ne.s32.totalorder %s154, %s156
      %p163 = scmp.eq.s32.totalorder %s27, 1
      %p164 = por %p162, %p163
      %p165 = scmp.ne.s32.totalorder %s156, %s157
      %p166 = scmp.eq.s32.totalorder %s27, 0
      %p167 = por %p165, %p166
      %p168 = scmp.ne.s32.totalorder %s156, %s157
      %p169 = scmp.eq.s32.totalorder %s28, 1
      %p170 = por %p168, %p169
      %p172 = scmp.ne.s32.totalorder %s157, %s171
      %p173 = scmp.eq.s32.totalorder %s28, 0
      %p174 = por %p172, %p173
      %s175 = ssub.s32 %s29, %s41
      %s176 = ssub.s32 %s30, %s37
      %s177 = sor.u32 %s175, %s176
      %p178 = scmp.eq.s32.totalorder %s177, 0
      %s180 = sadd.s32 %s179, 1
      %s181 = scalar_select %p178, %s179, %s180
      %p184 = pneg %p178
      %p185 = scmp.eq.s32.totalorder %s22, 1
      %p186 = por %p184, %p185
      %p187 = scmp.ne.s32.totalorder %s179, %s182
      %p188 = scmp.eq.s32.totalorder %s22, 0
      %p189 = por %p187, %p188
      %p190 = scmp.ne.s32.totalorder %s179, %s182
      %p191 = scmp.eq.s32.totalorder %s27, 1
      %p192 = por %p190, %p191
      %p193 = scmp.ne.s32.totalorder %s182, %s183
      %p194 = scmp.eq.s32.totalorder %s27, 0
      %p195 = por %p193, %p194
      %p196 = scmp.ne.s32.totalorder %s182, %s183
      %p197 = scmp.eq.s32.totalorder %s28, 1
      %p198 = por %p196, %p197
      %p200 = scmp.ne.s32.totalorder %s183, %s199
      %p201 = scmp.eq.s32.totalorder %s28, 0
      %p202 = por %p200, %p201
      %p203 = scmp.le.s32.totalorder 1, %s22
      %p204 = scmp.lt.s32.totalorder %s22, 3
      %p205 = pnand %p203, %p204
      %p206 = pneg %p205
      // Predicated region
      $region9: #{generator_forward.1} parent=5 // pred_check
        _
      $region10: #{generator_forward.1} parent=5 // pred_check_branch
        %208 = sbr.rel (%p205) target = $region12
      $region11: #{generator_forward.1} parent=5 // pred_region
        %s209 = ssub.s32 %s22, 1
        // Predicated region
        $region13: #{generator_forward.1} parent=11 // pred_check
          %p210 = pneg %p55
        $region14: #{generator_forward.1} parent=11 // pred_check_branch
          %212 = sbr.rel (%p210) target = $region16
        $region15: #{generator_forward.1} parent=11 // pred_region
          %s214 = ssub.s32 64, 64
          %215 = vsyncadd [#allocation6], %s214
          %218 = dma.hbm_to_smem %s0, 64, [#allocation3], [#allocation6]
        $region16: #{generator_forward.1} parent=11 // pred_fallthru
          _
        // Predicated region
        $region17: #{generator_forward.1} parent=11 // pred_check
          %p219 = pneg %p76
        $region18: #{generator_forward.1} parent=11 // pred_check_branch
          %221 = sbr.rel (%p219) target = $region20
        $region19: #{generator_forward.1} parent=11 // pred_region
          %s223 = ssub.s32 16, 16
          %224 = vsyncadd [#allocation7], %s223
          %s226 = sshll.u32 %s1, 4
          %s227 = int_to_ptr.vmem [resolvable:$true] %s226
          %229 = dma.vmem_to_smem %s227, 16, [#allocation8], [#allocation7]
        $region20: #{generator_forward.1} parent=11 // pred_fallthru
          _
        // Predicated region
        $region21: #{generator_forward.1} parent=11 // pred_check
          %p230 = pneg %p97
        $region22: #{generator_forward.1} parent=11 // pred_check_branch
          %232 = sbr.rel (%p230) target = $region24
        $region23: #{generator_forward.1} parent=11 // pred_region
          _
        $region24: #{generator_forward.1} parent=11 // pred_fallthru
          _
        // Predicated region
        $region25: #{generator_forward.1} parent=11 // pred_check
          %p233 = pneg %p146
        $region26: #{generator_forward.1} parent=11 // pred_check_branch
          %235 = sbr.rel (%p233) target = $region28
        $region27: #{generator_forward.1} parent=11 // pred_region
          _
        $region28: #{generator_forward.1} parent=11 // pred_fallthru
          _
        // Predicated region
        $region29: #{generator_forward.1} parent=11 // pred_check
          %p236 = pneg %p167
        $region30: #{generator_forward.1} parent=11 // pred_check_branch
          %238 = sbr.rel (%p236) target = $region32
        $region31: #{generator_forward.1} parent=11 // pred_region
          %s240 = ssub.s32 128, 128
          %241 = vsyncadd [#allocation11], %s240
          %s243 = sshll.u32 [#allocation10], 4
          %s244 = int_to_ptr.vmem [resolvable:$true] %s243
          %246 = dma.hbm_to_vmem [thread:$0]  %s5, 128, %s244, [#allocation11]
        $region32: #{generator_forward.1} parent=11 // pred_fallthru
          _
      $region12: #{generator_forward.1} parent=5 // pred_fallthru
        _
      %p247 = scmp.lt.s32.totalorder %s22, 2
      // Predicated region
      $region33: #{generator_forward.1} parent=5 // pred_check
        %p248 = pneg %p247
      $region34: #{generator_forward.1} parent=5 // pred_check_branch
        %250 = sbr.rel (%p248) target = $region36
      $region35: #{generator_forward.1} parent=5 // pred_region
        // Predicated region
        $region37: #{generator_forward.1} parent=35 // pred_check
          %p251 = pneg %p119
        $region38: #{generator_forward.1} parent=35 // pred_check_branch
          %253 = sbr.rel (%p251) target = $region40
        $region39: #{generator_forward.1} parent=35 // pred_region
          %s254 = sand.u32 %s109, 1
          %s255 = scalar_lea.sflag [#allocation4], %s254
          %s256 = sand.u32 %s109, 1
          %s257 = smul.addr %s256, 512
          %s258 = scalar_lea.vmem [#allocation9], %s257
          %s260 = ssub.s32 8192, 8192
          %261 = vsyncadd %s255, %s260
          %s262 = smul.addr %s30, 2
          %s263 = smul.addr %s29, 64
          %s264 = sadd.s32 %s262, %s263
          %s265 = smul.addr %s264, 128
          %s266 = scalar_lea.hbm %s3, %s265
          %s267 = sshll.u32 %s258, 4
          %s268 = int_to_ptr.vmem [resolvable:$true] %s267
          %273 = dma.hbm_to_vmem [thread:$0]  %s266, 8192, %s268, %s255, 256, 256, 16
        $region40: #{generator_forward.1} parent=35 // pred_fallthru
          _
      $region36: #{generator_forward.1} parent=5 // pred_fallthru
        _
      %p274 = scmp.le.s32.totalorder 1, %s22
      %p275 = scmp.lt.s32.totalorder %s22, 3
      %p276 = pnand %p274, %p275
      %p277 = pneg %p276
      // Predicated region
      $region41: #{generator_forward.1} parent=5 // pred_check
        _
      $region42: #{generator_forward.1} parent=5 // pred_check_branch
        %279 = sbr.rel (%p276) target = $region44
      $region43: #{generator_forward.1} parent=5 // pred_region
        %s280 = ssub.s32 %s22, 1
        // Predicated region
        $region45: #{generator_forward.1} parent=43 // pred_check
          %p281 = pneg %p55
        $region46: #{generator_forward.1} parent=43 // pred_check_branch
          %283 = sbr.rel (%p281) target = $region48
        $region47: #{generator_forward.1} parent=43 // pred_region
          %284 = dma.done [#allocation6], 64
        $region48: #{generator_forward.1} parent=43 // pred_fallthru
          _
        // Predicated region
        $region49: #{generator_forward.1} parent=43 // pred_check
          %p285 = pneg %p76
        $region50: #{generator_forward.1} parent=43 // pred_check_branch
          %287 = sbr.rel (%p285) target = $region52
        $region51: #{generator_forward.1} parent=43 // pred_region
          %288 = dma.done [#allocation7], 16
        $region52: #{generator_forward.1} parent=43 // pred_fallthru
          _
        %s289 = sand.u32 %s112, 1
        %s290 = scalar_lea.sflag [#allocation4], %s289
        %s291 = sand.u32 %s112, 1
        %s292 = smul.addr %s291, 512
        %s293 = scalar_lea.vmem [#allocation9], %s292
        // Predicated region
        $region53: #{generator_forward.1} parent=43 // pred_check
          %p294 = pneg %p125
        $region54: #{generator_forward.1} parent=43 // pred_check_branch
          %296 = sbr.rel (%p294) target = $region56
        $region55: #{generator_forward.1} parent=43 // pred_region
          %297 = dma.done %s290, 8192
        $region56: #{generator_forward.1} parent=43 // pred_fallthru
          _
        // Predicated region
        $region57: #{generator_forward.1} parent=43 // pred_check
          %p298 = pneg %p167
        $region58: #{generator_forward.1} parent=43 // pred_check_branch
          %300 = sbr.rel (%p298) target = $region60
        $region59: #{generator_forward.1} parent=43 // pred_region
          %301 = dma.done [#allocation11], 128
        $region60: #{generator_forward.1} parent=43 // pred_fallthru
          _
        %302 = sfence
        %p303 = pneg %p55
        %p304 = pneg %p52
        %p305 = pneg %p76
        %p306 = pneg %p73
        %p307 = pneg %p97
        %p308 = pneg %p94
        %s309 = sand.u32 %s112, 1
        %s310 = scalar_lea.sflag [#allocation4], %s309
        %s311 = sand.u32 %s112, 1
        %s312 = smul.addr %s311, 512
        %s313 = scalar_lea.vmem [#allocation9], %s312
        %p314 = pneg %p125
        %p315 = pneg %p122
        %p316 = pneg %p146
        %p317 = pneg %p143
        %p318 = pneg %p167
        %p319 = pneg %p164
        %p320 = pneg %p195
        %p321 = pneg %p192
        %s322 = sand.u32 %s182, 1
        %s323 = scalar_lea.sflag [#allocation5], %s322
        %s324 = sand.u32 %s182, 1
        %s325 = smul.addr %s324, 64
        %s326 = scalar_lea.vmem [#allocation12], %s325
        %s327 = sld [smem:[#allocation2]]
        %v328 = vld [vmem:[%s293] sm:$0xff]
        %v329 = vld [vmem:[%s293 + $0x8] sm:$0xff]
        %s330 = sld [smem:[#allocation3]]
        %v331 = vstv %s330
        %v332 = vmul.f32 %v328, %v331
        %v333 = vmul.f32 %v329, %v331
        %s334 = sld [smem:[#allocation3 + $0x80]]
        %v335 = vstv %s334
        %v336 = vmul.f32 %v328, %v335
        %v337 = vmul.f32 %v329, %v335
        %s338 = sld [smem:[#allocation3 + $0x100]]
        %v339 = vstv %s338
        %v340 = vmul.f32 %v328, %v339
        %v341 = vmul.f32 %v329, %v339
        %s342 = sld [smem:[#allocation3 + $0x180]]
        %v343 = vstv %s342
        %v344 = vmul.f32 %v328, %v343
        %v345 = vmul.f32 %v329, %v343
        %s346 = scalar_lea.vmem %s293, 16 [#allocation9]
        %v347 = vld [vmem:[%s346] sm:$0xff]
        %v348 = vld [vmem:[%s346 + $0x8] sm:$0xff]
        %s349 = sld [smem:[#allocation3 + $0x1]]
        %v350 = vstv %s349
        %v351 = vmul.f32 %v347, %v350
        %v352 = vmul.f32 %v348, %v350
        %v353 = vadd.f32 %v332, %v351
        %v354 = vadd.f32 %v333, %v352
        %s355 = sld [smem:[#allocation3 + $0x81]]
        %v356 = vstv %s355
        %v357 = vmul.f32 %v347, %v356
        %v358 = vmul.f32 %v348, %v356
        %v359 = vadd.f32 %v336, %v357
        %v360 = vadd.f32 %v337, %v358
        %s361 = sld [smem:[#allocation3 + $0x101]]
        %v362 = vstv %s361
        %v363 = vmul.f32 %v347, %v362
        %v364 = vmul.f32 %v348, %v362
        %v365 = vadd.f32 %v340, %v363
        %v366 = vadd.f32 %v341, %v364
        %s367 = sld [smem:[#allocation3 + $0x181]]
        %v368 = vstv %s367
        %v369 = vmul.f32 %v347, %v368
        %v370 = vmul.f32 %v348, %v368
        %v371 = vadd.f32 %v344, %v369
        %v372 = vadd.f32 %v345, %v370
        %s373 = scalar_lea.vmem %s293, 32 [#allocation9]
        %v374 = vld [vmem:[%s373] sm:$0xff]
        %v375 = vld [vmem:[%s373 + $0x8] sm:$0xff]
        %s376 = sld [smem:[#allocation3 + $0x2]]
        %v377 = vstv %s376
        %v378 = vmul.f32 %v374, %v377
        %v379 = vmul.f32 %v375, %v377
        %v380 = vadd.f32 %v353, %v378
        %v381 = vadd.f32 %v354, %v379
        %s382 = sld [smem:[#allocation3 + $0x82]]
        %v383 = vstv %s382
        %v384 = vmul.f32 %v374, %v383
        %v385 = vmul.f32 %v375, %v383
        %v386 = vadd.f32 %v359, %v384
        %v387 = vadd.f32 %v360, %v385
        %s388 = sld [smem:[#allocation3 + $0x102]]
        %v389 = vstv %s388
        %v390 = vmul.f32 %v374, %v389
        %v391 = vmul.f32 %v375, %v389
        %v392 = vadd.f32 %v365, %v390
        %v393 = vadd.f32 %v366, %v391
        %s394 = sld [smem:[#allocation3 + $0x182]]
        %v395 = vstv %s394
        %v396 = vmul.f32 %v374, %v395
        %v397 = vmul.f32 %v375, %v395
        %v398 = vadd.f32 %v371, %v396
        %v399 = vadd.f32 %v372, %v397
        %s400 = scalar_lea.vmem %s293, 48 [#allocation9]
        %v401 = vld [vmem:[%s400] sm:$0xff]
        %v402 = vld [vmem:[%s400 + $0x8] sm:$0xff]
        %s403 = sld [smem:[#allocation3 + $0x3]]
        %v404 = vstv %s403
        %v405 = vmul.f32 %v401, %v404
        %v406 = vmul.f32 %v402, %v404
        %v407 = vadd.f32 %v380, %v405
        %v408 = vadd.f32 %v381, %v406
        %s409 = sld [smem:[#allocation3 + $0x83]]
        %v410 = vstv %s409
        %v411 = vmul.f32 %v401, %v410
        %v412 = vmul.f32 %v402, %v410
        %v413 = vadd.f32 %v386, %v411
        %v414 = vadd.f32 %v387, %v412
        %s415 = sld [smem:[#allocation3 + $0x103]]
        %v416 = vstv %s415
        %v417 = vmul.f32 %v401, %v416
        %v418 = vmul.f32 %v402, %v416
        %v419 = vadd.f32 %v392, %v417
        %v420 = vadd.f32 %v393, %v418
        %s421 = sld [smem:[#allocation3 + $0x183]]
        %v422 = vstv %s421
        %v423 = vmul.f32 %v401, %v422
        %v424 = vmul.f32 %v402, %v422
        %v425 = vadd.f32 %v398, %v423
        %v426 = vadd.f32 %v399, %v424
        %s427 = scalar_lea.vmem %s293, 64 [#allocation9]
        %v428 = vld [vmem:[%s427] sm:$0xff]
        %v429 = vld [vmem:[%s427 + $0x8] sm:$0xff]
        %s430 = sld [smem:[#allocation3 + $0x4]]
        %v431 = vstv %s430
        %v432 = vmul.f32 %v428, %v431
        %v433 = vmul.f32 %v429, %v431
        %v434 = vadd.f32 %v407, %v432
        %v435 = vadd.f32 %v408, %v433
        %s436 = sld [smem:[#allocation3 + $0x84]]
        %v437 = vstv %s436
        %v438 = vmul.f32 %v428, %v437
        %v439 = vmul.f32 %v429, %v437
        %v440 = vadd.f32 %v413, %v438
        %v441 = vadd.f32 %v414, %v439
        %s442 = sld [smem:[#allocation3 + $0x104]]
        %v443 = vstv %s442
        %v444 = vmul.f32 %v428, %v443
        %v445 = vmul.f32 %v429, %v443
        %v446 = vadd.f32 %v419, %v444
        %v447 = vadd.f32 %v420, %v445
        %s448 = sld [smem:[#allocation3 + $0x184]]
        %v449 = vstv %s448
        %v450 = vmul.f32 %v428, %v449
        %v451 = vmul.f32 %v429, %v449
        %v452 = vadd.f32 %v425, %v450
        %v453 = vadd.f32 %v426, %v451
        %s454 = scalar_lea.vmem %s293, 80 [#allocation9]
        %v455 = vld [vmem:[%s454] sm:$0xff]
        %v456 = vld [vmem:[%s454 + $0x8] sm:$0xff]
        %s457 = sld [smem:[#allocation3 + $0x5]]
        %v458 = vstv %s457
        %v459 = vmul.f32 %v455, %v458
        %v460 = vmul.f32 %v456, %v458
        %v461 = vadd.f32 %v434, %v459
        %v462 = vadd.f32 %v435, %v460
        %s463 = sld [smem:[#allocation3 + $0x85]]
        %v464 = vstv %s463
        %v465 = vmul.f32 %v455, %v464
        %v466 = vmul.f32 %v456, %v464
        %v467 = vadd.f32 %v440, %v465
        %v468 = vadd.f32 %v441, %v466
        %s469 = sld [smem:[#allocation3 + $0x105]]
        %v470 = vstv %s469
        %v471 = vmul.f32 %v455, %v470
        %v472 = vmul.f32 %v456, %v470
        %v473 = vadd.f32 %v446, %v471
        %v474 = vadd.f32 %v447, %v472
        %s475 = sld [smem:[#allocation3 + $0x185]]
        %v476 = vstv %s475
        %v477 = vmul.f32 %v455, %v476
        %v478 = vmul.f32 %v456, %v476
        %v479 = vadd.f32 %v452, %v477
        %v480 = vadd.f32 %v453, %v478
        %s481 = scalar_lea.vmem %s293, 96 [#allocation9]
        %v482 = vld [vmem:[%s481] sm:$0xff]
        %v483 = vld [vmem:[%s481 + $0x8] sm:$0xff]
        %s484 = sld [smem:[#allocation3 + $0x6]]
        %v485 = vstv %s484
        %v486 = vmul.f32 %v482, %v485
        %v487 = vmul.f32 %v483, %v485
        %v488 = vadd.f32 %v461, %v486
        %v489 = vadd.f32 %v462, %v487
        %s490 = sld [smem:[#allocation3 + $0x86]]
        %v491 = vstv %s490
        %v492 = vmul.f32 %v482, %v491
        %v493 = vmul.f32 %v483, %v491
        %v494 = vadd.f32 %v467, %v492
        %v495 = vadd.f32 %v468, %v493
        %s496 = sld [smem:[#allocation3 + $0x106]]
        %v497 = vstv %s496
        %v498 = vmul.f32 %v482, %v497
        %v499 = vmul.f32 %v483, %v497
        %v500 = vadd.f32 %v473, %v498
        %v501 = vadd.f32 %v474, %v499
        %s502 = sld [smem:[#allocation3 + $0x186]]
        %v503 = vstv %s502
        %v504 = vmul.f32 %v482, %v503
        %v505 = vmul.f32 %v483, %v503
        %v506 = vadd.f32 %v479, %v504
        %v507 = vadd.f32 %v480, %v505
        %s508 = scalar_lea.vmem %s293, 112 [#allocation9]
        %v509 = vld [vmem:[%s508] sm:$0xff]
        %v510 = vld [vmem:[%s508 + $0x8] sm:$0xff]
        %s511 = sld [smem:[#allocation3 + $0x7]]
        %v512 = vstv %s511
        %v513 = vmul.f32 %v509, %v512
        %v514 = vmul.f32 %v510, %v512
        %v515 = vadd.f32 %v488, %v513
        %v516 = vadd.f32 %v489, %v514
        %s517 = sld [smem:[#allocation3 + $0x87]]
        %v518 = vstv %s517
        %v519 = vmul.f32 %v509, %v518
        %v520 = vmul.f32 %v510, %v518
        %v521 = vadd.f32 %v494, %v519
        %v522 = vadd.f32 %v495, %v520
        %s523 = sld [smem:[#allocation3 + $0x107]]
        %v524 = vstv %s523
        %v525 = vmul.f32 %v509, %v524
        %v526 = vmul.f32 %v510, %v524
        %v527 = vadd.f32 %v500, %v525
        %v528 = vadd.f32 %v501, %v526
        %s529 = sld [smem:[#allocation3 + $0x187]]
        %v530 = vstv %s529
        %v531 = vmul.f32 %v509, %v530
        %v532 = vmul.f32 %v510, %v530
        %v533 = vadd.f32 %v506, %v531
        %v534 = vadd.f32 %v507, %v532
        %s535 = scalar_lea.vmem %s293, 128 [#allocation9]
        %v536 = vld [vmem:[%s535] sm:$0xff]
        %v537 = vld [vmem:[%s535 + $0x8] sm:$0xff]
        %s538 = sld [smem:[#allocation3 + $0x8]]
        %v539 = vstv %s538
        %v540 = vmul.f32 %v536, %v539
        %v541 = vmul.f32 %v537, %v539
        %v542 = vadd.f32 %v515, %v540
        %v543 = vadd.f32 %v516, %v541
        %s544 = sld [smem:[#allocation3 + $0x88]]
        %v545 = vstv %s544
        %v546 = vmul.f32 %v536, %v545
        %v547 = vmul.f32 %v537, %v545
        %v548 = vadd.f32 %v521, %v546
        %v549 = vadd.f32 %v522, %v547
        %s550 = sld [smem:[#allocation3 + $0x108]]
        %v551 = vstv %s550
        %v552 = vmul.f32 %v536, %v551
        %v553 = vmul.f32 %v537, %v551
        %v554 = vadd.f32 %v527, %v552
        %v555 = vadd.f32 %v528, %v553
        %s556 = sld [smem:[#allocation3 + $0x188]]
        %v557 = vstv %s556
        %v558 = vmul.f32 %v536, %v557
        %v559 = vmul.f32 %v537, %v557
        %v560 = vadd.f32 %v533, %v558
        %v561 = vadd.f32 %v534, %v559
        %s562 = scalar_lea.vmem %s293, 144 [#allocation9]
        %v563 = vld [vmem:[%s562] sm:$0xff]
        %v564 = vld [vmem:[%s562 + $0x8] sm:$0xff]
        %s565 = sld [smem:[#allocation3 + $0x9]]
        %v566 = vstv %s565
        %v567 = vmul.f32 %v563, %v566
        %v568 = vmul.f32 %v564, %v566
        %v569 = vadd.f32 %v542, %v567
        %v570 = vadd.f32 %v543, %v568
        %s571 = sld [smem:[#allocation3 + $0x89]]
        %v572 = vstv %s571
        %v573 = vmul.f32 %v563, %v572
        %v574 = vmul.f32 %v564, %v572
        %v575 = vadd.f32 %v548, %v573
        %v576 = vadd.f32 %v549, %v574
        %s577 = sld [smem:[#allocation3 + $0x109]]
        %v578 = vstv %s577
        %v579 = vmul.f32 %v563, %v578
        %v580 = vmul.f32 %v564, %v578
        %v581 = vadd.f32 %v554, %v579
        %v582 = vadd.f32 %v555, %v580
        %s583 = sld [smem:[#allocation3 + $0x189]]
        %v584 = vstv %s583
        %v585 = vmul.f32 %v563, %v584
        %v586 = vmul.f32 %v564, %v584
        %v587 = vadd.f32 %v560, %v585
        %v588 = vadd.f32 %v561, %v586
        %s589 = scalar_lea.vmem %s293, 160 [#allocation9]
        %v590 = vld [vmem:[%s589] sm:$0xff]
        %v591 = vld [vmem:[%s589 + $0x8] sm:$0xff]
        %s592 = sld [smem:[#allocation3 + $0xa]]
        %v593 = vstv %s592
        %v594 = vmul.f32 %v590, %v593
        %v595 = vmul.f32 %v591, %v593
        %v596 = vadd.f32 %v569, %v594
        %v597 = vadd.f32 %v570, %v595
        %s598 = sld [smem:[#allocation3 + $0x8a]]
        %v599 = vstv %s598
        %v600 = vmul.f32 %v590, %v599
        %v601 = vmul.f32 %v591, %v599
        %v602 = vadd.f32 %v575, %v600
        %v603 = vadd.f32 %v576, %v601
        %s604 = sld [smem:[#allocation3 + $0x10a]]
        %v605 = vstv %s604
        %v606 = vmul.f32 %v590, %v605
        %v607 = vmul.f32 %v591, %v605
        %v608 = vadd.f32 %v581, %v606
        %v609 = vadd.f32 %v582, %v607
        %s610 = sld [smem:[#allocation3 + $0x18a]]
        %v611 = vstv %s610
        %v612 = vmul.f32 %v590, %v611
        %v613 = vmul.f32 %v591, %v611
        %v614 = vadd.f32 %v587, %v612
        %v615 = vadd.f32 %v588, %v613
        %s616 = scalar_lea.vmem %s293, 176 [#allocation9]
        %v617 = vld [vmem:[%s616] sm:$0xff]
        %v618 = vld [vmem:[%s616 + $0x8] sm:$0xff]
        %s619 = sld [smem:[#allocation3 + $0xb]]
        %v620 = vstv %s619
        %v621 = vmul.f32 %v617, %v620
        %v622 = vmul.f32 %v618, %v620
        %v623 = vadd.f32 %v596, %v621
        %v624 = vadd.f32 %v597, %v622
        %s625 = sld [smem:[#allocation3 + $0x8b]]
        %v626 = vstv %s625
        %v627 = vmul.f32 %v617, %v626
        %v628 = vmul.f32 %v618, %v626
        %v629 = vadd.f32 %v602, %v627
        %v630 = vadd.f32 %v603, %v628
        %s631 = sld [smem:[#allocation3 + $0x10b]]
        %v632 = vstv %s631
        %v633 = vmul.f32 %v617, %v632
        %v634 = vmul.f32 %v618, %v632
        %v635 = vadd.f32 %v608, %v633
        %v636 = vadd.f32 %v609, %v634
        %s637 = sld [smem:[#allocation3 + $0x18b]]
        %v638 = vstv %s637
        %v639 = vmul.f32 %v617, %v638
        %v640 = vmul.f32 %v618, %v638
        %v641 = vadd.f32 %v614, %v639
        %v642 = vadd.f32 %v615, %v640
        %s643 = scalar_lea.vmem %s293, 192 [#allocation9]
        %v644 = vld [vmem:[%s643] sm:$0xff]
        %v645 = vld [vmem:[%s643 + $0x8] sm:$0xff]
        %s646 = sld [smem:[#allocation3 + $0xc]]
        %v647 = vstv %s646
        %v648 = vmul.f32 %v644, %v647
        %v649 = vmul.f32 %v645, %v647
        %v650 = vadd.f32 %v623, %v648
        %v651 = vadd.f32 %v624, %v649
        %s652 = sld [smem:[#allocation3 + $0x8c]]
        %v653 = vstv %s652
        %v654 = vmul.f32 %v644, %v653
        %v655 = vmul.f32 %v645, %v653
        %v656 = vadd.f32 %v629, %v654
        %v657 = vadd.f32 %v630, %v655
        %s658 = sld [smem:[#allocation3 + $0x10c]]
        %v659 = vstv %s658
        %v660 = vmul.f32 %v644, %v659
        %v661 = vmul.f32 %v645, %v659
        %v662 = vadd.f32 %v635, %v660
        %v663 = vadd.f32 %v636, %v661
        %s664 = sld [smem:[#allocation3 + $0x18c]]
        %v665 = vstv %s664
        %v666 = vmul.f32 %v644, %v665
        %v667 = vmul.f32 %v645, %v665
        %v668 = vadd.f32 %v641, %v666
        %v669 = vadd.f32 %v642, %v667
        %s670 = scalar_lea.vmem %s293, 208 [#allocation9]
        %v671 = vld [vmem:[%s670] sm:$0xff]
        %v672 = vld [vmem:[%s670 + $0x8] sm:$0xff]
        %s673 = sld [smem:[#allocation3 + $0xd]]
        %v674 = vstv %s673
        %v675 = vmul.f32 %v671, %v674
        %v676 = vmul.f32 %v672, %v674
        %v677 = vadd.f32 %v650, %v675
        %v678 = vadd.f32 %v651, %v676
        %s679 = sld [smem:[#allocation3 + $0x8d]]
        %v680 = vstv %s679
        %v681 = vmul.f32 %v671, %v680
        %v682 = vmul.f32 %v672, %v680
        %v683 = vadd.f32 %v656, %v681
        %v684 = vadd.f32 %v657, %v682
        %s685 = sld [smem:[#allocation3 + $0x10d]]
        %v686 = vstv %s685
        %v687 = vmul.f32 %v671, %v686
        %v688 = vmul.f32 %v672, %v686
        %v689 = vadd.f32 %v662, %v687
        %v690 = vadd.f32 %v663, %v688
        %s691 = sld [smem:[#allocation3 + $0x18d]]
        %v692 = vstv %s691
        %v693 = vmul.f32 %v671, %v692
        %v694 = vmul.f32 %v672, %v692
        %v695 = vadd.f32 %v668, %v693
        %v696 = vadd.f32 %v669, %v694
        %s697 = scalar_lea.vmem %s293, 224 [#allocation9]
        %v698 = vld [vmem:[%s697] sm:$0xff]
        %v699 = vld [vmem:[%s697 + $0x8] sm:$0xff]
        %s700 = sld [smem:[#allocation3 + $0xe]]
        %v701 = vstv %s700
        %v702 = vmul.f32 %v698, %v701
        %v703 = vmul.f32 %v699, %v701
        %v704 = vadd.f32 %v677, %v702
        %v705 = vadd.f32 %v678, %v703
        %s706 = sld [smem:[#allocation3 + $0x8e]]
        %v707 = vstv %s706
        %v708 = vmul.f32 %v698, %v707
        %v709 = vmul.f32 %v699, %v707
        %v710 = vadd.f32 %v683, %v708
        %v711 = vadd.f32 %v684, %v709
        %s712 = sld [smem:[#allocation3 + $0x10e]]
        %v713 = vstv %s712
        %v714 = vmul.f32 %v698, %v713
        %v715 = vmul.f32 %v699, %v713
        %v716 = vadd.f32 %v689, %v714
        %v717 = vadd.f32 %v690, %v715
        %s718 = sld [smem:[#allocation3 + $0x18e]]
        %v719 = vstv %s718
        %v720 = vmul.f32 %v698, %v719
        %v721 = vmul.f32 %v699, %v719
        %v722 = vadd.f32 %v695, %v720
        %v723 = vadd.f32 %v696, %v721
        %s724 = scalar_lea.vmem %s293, 240 [#allocation9]
        %v725 = vld [vmem:[%s724] sm:$0xff]
        %v726 = vld [vmem:[%s724 + $0x8] sm:$0xff]
        %s727 = sld [smem:[#allocation3 + $0xf]]
        %v728 = vstv %s727
        %v729 = vmul.f32 %v725, %v728
        %v730 = vmul.f32 %v726, %v728
        %v731 = vadd.f32 %v704, %v729
        %v732 = vadd.f32 %v705, %v730
        %s733 = sld [smem:[#allocation3 + $0x8f]]
        %v734 = vstv %s733
        %v735 = vmul.f32 %v725, %v734
        %v736 = vmul.f32 %v726, %v734
        %v737 = vadd.f32 %v710, %v735
        %v738 = vadd.f32 %v711, %v736
        %s739 = sld [smem:[#allocation3 + $0x10f]]
        %v740 = vstv %s739
        %v741 = vmul.f32 %v725, %v740
        %v742 = vmul.f32 %v726, %v740
        %v743 = vadd.f32 %v716, %v741
        %v744 = vadd.f32 %v717, %v742
        %s745 = sld [smem:[#allocation3 + $0x18f]]
        %v746 = vstv %s745
        %v747 = vmul.f32 %v725, %v746
        %v748 = vmul.f32 %v726, %v746
        %v749 = vadd.f32 %v722, %v747
        %v750 = vadd.f32 %v723, %v748
        %s751 = scalar_lea.vmem %s293, 256 [#allocation9]
        %v752 = vld [vmem:[%s751] sm:$0xff]
        %v753 = vld [vmem:[%s751 + $0x8] sm:$0xff]
        %s754 = sld [smem:[#allocation3 + $0x10]]
        %v755 = vstv %s754
        %v756 = vmul.f32 %v752, %v755
        %v757 = vmul.f32 %v753, %v755
        %v758 = vadd.f32 %v731, %v756
        %v759 = vadd.f32 %v732, %v757
        %s760 = sld [smem:[#allocation3 + $0x90]]
        %v761 = vstv %s760
        %v762 = vmul.f32 %v752, %v761
        %v763 = vmul.f32 %v753, %v761
        %v764 = vadd.f32 %v737, %v762
        %v765 = vadd.f32 %v738, %v763
        %s766 = sld [smem:[#allocation3 + $0x110]]
        %v767 = vstv %s766
        %v768 = vmul.f32 %v752, %v767
        %v769 = vmul.f32 %v753, %v767
        %v770 = vadd.f32 %v743, %v768
        %v771 = vadd.f32 %v744, %v769
        %s772 = sld [smem:[#allocation3 + $0x190]]
        %v773 = vstv %s772
        %v774 = vmul.f32 %v752, %v773
        %v775 = vmul.f32 %v753, %v773
        %v776 = vadd.f32 %v749, %v774
        %v777 = vadd.f32 %v750, %v775
        %s778 = scalar_lea.vmem %s293, 272 [#allocation9]
        %v779 = vld [vmem:[%s778] sm:$0xff]
        %v780 = vld [vmem:[%s778 + $0x8] sm:$0xff]
        %s781 = sld [smem:[#allocation3 + $0x11]]
        %v782 = vstv %s781
        %v783 = vmul.f32 %v779, %v782
        %v784 = vmul.f32 %v780, %v782
        %v785 = vadd.f32 %v758, %v783
        %v786 = vadd.f32 %v759, %v784
        %s787 = sld [smem:[#allocation3 + $0x91]]
        %v788 = vstv %s787
        %v789 = vmul.f32 %v779, %v788
        %v790 = vmul.f32 %v780, %v788
        %v791 = vadd.f32 %v764, %v789
        %v792 = vadd.f32 %v765, %v790
        %s793 = sld [smem:[#allocation3 + $0x111]]
        %v794 = vstv %s793
        %v795 = vmul.f32 %v779, %v794
        %v796 = vmul.f32 %v780, %v794
        %v797 = vadd.f32 %v770, %v795
        %v798 = vadd.f32 %v771, %v796
        %s799 = sld [smem:[#allocation3 + $0x191]]
        %v800 = vstv %s799
        %v801 = vmul.f32 %v779, %v800
        %v802 = vmul.f32 %v780, %v800
        %v803 = vadd.f32 %v776, %v801
        %v804 = vadd.f32 %v777, %v802
        %s805 = scalar_lea.vmem %s293, 288 [#allocation9]
        %v806 = vld [vmem:[%s805] sm:$0xff]
        %v807 = vld [vmem:[%s805 + $0x8] sm:$0xff]
        %s808 = sld [smem:[#allocation3 + $0x12]]
        %v809 = vstv %s808
        %v810 = vmul.f32 %v806, %v809
        %v811 = vmul.f32 %v807, %v809
        %v812 = vadd.f32 %v785, %v810
        %v813 = vadd.f32 %v786, %v811
        %s814 = sld [smem:[#allocation3 + $0x92]]
        %v815 = vstv %s814
        %v816 = vmul.f32 %v806, %v815
        %v817 = vmul.f32 %v807, %v815
        %v818 = vadd.f32 %v791, %v816
        %v819 = vadd.f32 %v792, %v817
        %s820 = sld [smem:[#allocation3 + $0x112]]
        %v821 = vstv %s820
        %v822 = vmul.f32 %v806, %v821
        %v823 = vmul.f32 %v807, %v821
        %v824 = vadd.f32 %v797, %v822
        %v825 = vadd.f32 %v798, %v823
        %s826 = sld [smem:[#allocation3 + $0x192]]
        %v827 = vstv %s826
        %v828 = vmul.f32 %v806, %v827
        %v829 = vmul.f32 %v807, %v827
        %v830 = vadd.f32 %v803, %v828
        %v831 = vadd.f32 %v804, %v829
        %s832 = scalar_lea.vmem %s293, 304 [#allocation9]
        %v833 = vld [vmem:[%s832] sm:$0xff]
        %v834 = vld [vmem:[%s832 + $0x8] sm:$0xff]
        %s835 = sld [smem:[#allocation3 + $0x13]]
        %v836 = vstv %s835
        %v837 = vmul.f32 %v833, %v836
        %v838 = vmul.f32 %v834, %v836
        %v839 = vadd.f32 %v812, %v837
        %v840 = vadd.f32 %v813, %v838
        %s841 = sld [smem:[#allocation3 + $0x93]]
        %v842 = vstv %s841
        %v843 = vmul.f32 %v833, %v842
        %v844 = vmul.f32 %v834, %v842
        %v845 = vadd.f32 %v818, %v843
        %v846 = vadd.f32 %v819, %v844
        %s847 = sld [smem:[#allocation3 + $0x113]]
        %v848 = vstv %s847
        %v849 = vmul.f32 %v833, %v848
        %v850 = vmul.f32 %v834, %v848
        %v851 = vadd.f32 %v824, %v849
        %v852 = vadd.f32 %v825, %v850
        %s853 = sld [smem:[#allocation3 + $0x193]]
        %v854 = vstv %s853
        %v855 = vmul.f32 %v833, %v854
        %v856 = vmul.f32 %v834, %v854
        %v857 = vadd.f32 %v830, %v855
        %v858 = vadd.f32 %v831, %v856
        %s859 = scalar_lea.vmem %s293, 320 [#allocation9]
        %v860 = vld [vmem:[%s859] sm:$0xff]
        %v861 = vld [vmem:[%s859 + $0x8] sm:$0xff]
        %s862 = sld [smem:[#allocation3 + $0x14]]
        %v863 = vstv %s862
        %v864 = vmul.f32 %v860, %v863
        %v865 = vmul.f32 %v861, %v863
        %v866 = vadd.f32 %v839, %v864
        %v867 = vadd.f32 %v840, %v865
        %s868 = sld [smem:[#allocation3 + $0x94]]
        %v869 = vstv %s868
        %v870 = vmul.f32 %v860, %v869
        %v871 = vmul.f32 %v861, %v869
        %v872 = vadd.f32 %v845, %v870
        %v873 = vadd.f32 %v846, %v871
        %s874 = sld [smem:[#allocation3 + $0x114]]
        %v875 = vstv %s874
        %v876 = vmul.f32 %v860, %v875
        %v877 = vmul.f32 %v861, %v875
        %v878 = vadd.f32 %v851, %v876
        %v879 = vadd.f32 %v852, %v877
        %s880 = sld [smem:[#allocation3 + $0x194]]
        %v881 = vstv %s880
        %v882 = vmul.f32 %v860, %v881
        %v883 = vmul.f32 %v861, %v881
        %v884 = vadd.f32 %v857, %v882
        %v885 = vadd.f32 %v858, %v883
        %s886 = scalar_lea.vmem %s293, 336 [#allocation9]
        %v887 = vld [vmem:[%s886] sm:$0xff]
        %v888 = vld [vmem:[%s886 + $0x8] sm:$0xff]
        %s889 = sld [smem:[#allocation3 + $0x15]]
        %v890 = vstv %s889
        %v891 = vmul.f32 %v887, %v890
        %v892 = vmul.f32 %v888, %v890
        %v893 = vadd.f32 %v866, %v891
        %v894 = vadd.f32 %v867, %v892
        %s895 = sld [smem:[#allocation3 + $0x95]]
        %v896 = vstv %s895
        %v897 = vmul.f32 %v887, %v896
        %v898 = vmul.f32 %v888, %v896
        %v899 = vadd.f32 %v872, %v897
        %v900 = vadd.f32 %v873, %v898
        %s901 = sld [smem:[#allocation3 + $0x115]]
        %v902 = vstv %s901
        %v903 = vmul.f32 %v887, %v902
        %v904 = vmul.f32 %v888, %v902
        %v905 = vadd.f32 %v878, %v903
        %v906 = vadd.f32 %v879, %v904
        %s907 = sld [smem:[#allocation3 + $0x195]]
        %v908 = vstv %s907
        %v909 = vmul.f32 %v887, %v908
        %v910 = vmul.f32 %v888, %v908
        %v911 = vadd.f32 %v884, %v909
        %v912 = vadd.f32 %v885, %v910
        %s913 = scalar_lea.vmem %s293, 352 [#allocation9]
        %v914 = vld [vmem:[%s913] sm:$0xff]
        %v915 = vld [vmem:[%s913 + $0x8] sm:$0xff]
        %s916 = sld [smem:[#allocation3 + $0x16]]
        %v917 = vstv %s916
        %v918 = vmul.f32 %v914, %v917
        %v919 = vmul.f32 %v915, %v917
        %v920 = vadd.f32 %v893, %v918
        %v921 = vadd.f32 %v894, %v919
        %s922 = sld [smem:[#allocation3 + $0x96]]
        %v923 = vstv %s922
        %v924 = vmul.f32 %v914, %v923
        %v925 = vmul.f32 %v915, %v923
        %v926 = vadd.f32 %v899, %v924
        %v927 = vadd.f32 %v900, %v925
        %s928 = sld [smem:[#allocation3 + $0x116]]
        %v929 = vstv %s928
        %v930 = vmul.f32 %v914, %v929
        %v931 = vmul.f32 %v915, %v929
        %v932 = vadd.f32 %v905, %v930
        %v933 = vadd.f32 %v906, %v931
        %s934 = sld [smem:[#allocation3 + $0x196]]
        %v935 = vstv %s934
        %v936 = vmul.f32 %v914, %v935
        %v937 = vmul.f32 %v915, %v935
        %v938 = vadd.f32 %v911, %v936
        %v939 = vadd.f32 %v912, %v937
        %s940 = scalar_lea.vmem %s293, 368 [#allocation9]
        %v941 = vld [vmem:[%s940] sm:$0xff]
        %v942 = vld [vmem:[%s940 + $0x8] sm:$0xff]
        %s943 = sld [smem:[#allocation3 + $0x17]]
        %v944 = vstv %s943
        %v945 = vmul.f32 %v941, %v944
        %v946 = vmul.f32 %v942, %v944
        %v947 = vadd.f32 %v920, %v945
        %v948 = vadd.f32 %v921, %v946
        %s949 = sld [smem:[#allocation3 + $0x97]]
        %v950 = vstv %s949
        %v951 = vmul.f32 %v941, %v950
        %v952 = vmul.f32 %v942, %v950
        %v953 = vadd.f32 %v926, %v951
        %v954 = vadd.f32 %v927, %v952
        %s955 = sld [smem:[#allocation3 + $0x117]]
        %v956 = vstv %s955
        %v957 = vmul.f32 %v941, %v956
        %v958 = vmul.f32 %v942, %v956
        %v959 = vadd.f32 %v932, %v957
        %v960 = vadd.f32 %v933, %v958
        %s961 = sld [smem:[#allocation3 + $0x197]]
        %v962 = vstv %s961
        %v963 = vmul.f32 %v941, %v962
        %v964 = vmul.f32 %v942, %v962
        %v965 = vadd.f32 %v938, %v963
        %v966 = vadd.f32 %v939, %v964
        %s967 = scalar_lea.vmem %s293, 384 [#allocation9]
        %v968 = vld [vmem:[%s967] sm:$0xff]
        %v969 = vld [vmem:[%s967 + $0x8] sm:$0xff]
        %s970 = sld [smem:[#allocation3 + $0x18]]
        %v971 = vstv %s970
        %v972 = vmul.f32 %v968, %v971
        %v973 = vmul.f32 %v969, %v971
        %v974 = vadd.f32 %v947, %v972
        %v975 = vadd.f32 %v948, %v973
        %s976 = sld [smem:[#allocation3 + $0x98]]
        %v977 = vstv %s976
        %v978 = vmul.f32 %v968, %v977
        %v979 = vmul.f32 %v969, %v977
        %v980 = vadd.f32 %v953, %v978
        %v981 = vadd.f32 %v954, %v979
        %s982 = sld [smem:[#allocation3 + $0x118]]
        %v983 = vstv %s982
        %v984 = vmul.f32 %v968, %v983
        %v985 = vmul.f32 %v969, %v983
        %v986 = vadd.f32 %v959, %v984
        %v987 = vadd.f32 %v960, %v985
        %s988 = sld [smem:[#allocation3 + $0x198]]
        %v989 = vstv %s988
        %v990 = vmul.f32 %v968, %v989
        %v991 = vmul.f32 %v969, %v989
        %v992 = vadd.f32 %v965, %v990
        %v993 = vadd.f32 %v966, %v991
        %s994 = scalar_lea.vmem %s293, 400 [#allocation9]
        %v995 = vld [vmem:[%s994] sm:$0xff]
        %v996 = vld [vmem:[%s994 + $0x8] sm:$0xff]
        %s997 = sld [smem:[#allocation3 + $0x19]]
        %v998 = vstv %s997
        %v999 = vmul.f32 %v995, %v998
        %v1000 = vmul.f32 %v996, %v998
        %v1001 = vadd.f32 %v974, %v999
        %v1002 = vadd.f32 %v975, %v1000
        %s1003 = sld [smem:[#allocation3 + $0x99]]
        %v1004 = vstv %s1003
        %v1005 = vmul.f32 %v995, %v1004
        %v1006 = vmul.f32 %v996, %v1004
        %v1007 = vadd.f32 %v980, %v1005
        %v1008 = vadd.f32 %v981, %v1006
        %s1009 = sld [smem:[#allocation3 + $0x119]]
        %v1010 = vstv %s1009
        %v1011 = vmul.f32 %v995, %v1010
        %v1012 = vmul.f32 %v996, %v1010
        %v1013 = vadd.f32 %v986, %v1011
        %v1014 = vadd.f32 %v987, %v1012
        %s1015 = sld [smem:[#allocation3 + $0x199]]
        %v1016 = vstv %s1015
        %v1017 = vmul.f32 %v995, %v1016
        %v1018 = vmul.f32 %v996, %v1016
        %v1019 = vadd.f32 %v992, %v1017
        %v1020 = vadd.f32 %v993, %v1018
        %s1021 = scalar_lea.vmem %s293, 416 [#allocation9]
        %v1022 = vld [vmem:[%s1021] sm:$0xff]
        %v1023 = vld [vmem:[%s1021 + $0x8] sm:$0xff]
        %s1024 = sld [smem:[#allocation3 + $0x1a]]
        %v1025 = vstv %s1024
        %v1026 = vmul.f32 %v1022, %v1025
        %v1027 = vmul.f32 %v1023, %v1025
        %v1028 = vadd.f32 %v1001, %v1026
        %v1029 = vadd.f32 %v1002, %v1027
        %s1030 = sld [smem:[#allocation3 + $0x9a]]
        %v1031 = vstv %s1030
        %v1032 = vmul.f32 %v1022, %v1031
        %v1033 = vmul.f32 %v1023, %v1031
        %v1034 = vadd.f32 %v1007, %v1032
        %v1035 = vadd.f32 %v1008, %v1033
        %s1036 = sld [smem:[#allocation3 + $0x11a]]
        %v1037 = vstv %s1036
        %v1038 = vmul.f32 %v1022, %v1037
        %v1039 = vmul.f32 %v1023, %v1037
        %v1040 = vadd.f32 %v1013, %v1038
        %v1041 = vadd.f32 %v1014, %v1039
        %s1042 = sld [smem:[#allocation3 + $0x19a]]
        %v1043 = vstv %s1042
        %v1044 = vmul.f32 %v1022, %v1043
        %v1045 = vmul.f32 %v1023, %v1043
        %v1046 = vadd.f32 %v1019, %v1044
        %v1047 = vadd.f32 %v1020, %v1045
        %s1048 = scalar_lea.vmem %s293, 432 [#allocation9]
        %v1049 = vld [vmem:[%s1048] sm:$0xff]
        %v1050 = vld [vmem:[%s1048 + $0x8] sm:$0xff]
        %s1051 = sld [smem:[#allocation3 + $0x1b]]
        %v1052 = vstv %s1051
        %v1053 = vmul.f32 %v1049, %v1052
        %v1054 = vmul.f32 %v1050, %v1052
        %v1055 = vadd.f32 %v1028, %v1053
        %v1056 = vadd.f32 %v1029, %v1054
        %s1057 = sld [smem:[#allocation3 + $0x9b]]
        %v1058 = vstv %s1057
        %v1059 = vmul.f32 %v1049, %v1058
        %v1060 = vmul.f32 %v1050, %v1058
        %v1061 = vadd.f32 %v1034, %v1059
        %v1062 = vadd.f32 %v1035, %v1060
        %s1063 = sld [smem:[#allocation3 + $0x11b]]
        %v1064 = vstv %s1063
        %v1065 = vmul.f32 %v1049, %v1064
        %v1066 = vmul.f32 %v1050, %v1064
        %v1067 = vadd.f32 %v1040, %v1065
        %v1068 = vadd.f32 %v1041, %v1066
        %s1069 = sld [smem:[#allocation3 + $0x19b]]
        %v1070 = vstv %s1069
        %v1071 = vmul.f32 %v1049, %v1070
        %v1072 = vmul.f32 %v1050, %v1070
        %v1073 = vadd.f32 %v1046, %v1071
        %v1074 = vadd.f32 %v1047, %v1072
        %s1075 = scalar_lea.vmem %s293, 448 [#allocation9]
        %v1076 = vld [vmem:[%s1075] sm:$0xff]
        %v1077 = vld [vmem:[%s1075 + $0x8] sm:$0xff]
        %s1078 = sld [smem:[#allocation3 + $0x1c]]
        %v1079 = vstv %s1078
        %v1080 = vmul.f32 %v1076, %v1079
        %v1081 = vmul.f32 %v1077, %v1079
        %v1082 = vadd.f32 %v1055, %v1080
        %v1083 = vadd.f32 %v1056, %v1081
        %s1084 = sld [smem:[#allocation3 + $0x9c]]
        %v1085 = vstv %s1084
        %v1086 = vmul.f32 %v1076, %v1085
        %v1087 = vmul.f32 %v1077, %v1085
        %v1088 = vadd.f32 %v1061, %v1086
        %v1089 = vadd.f32 %v1062, %v1087
        %s1090 = sld [smem:[#allocation3 + $0x11c]]
        %v1091 = vstv %s1090
        %v1092 = vmul.f32 %v1076, %v1091
        %v1093 = vmul.f32 %v1077, %v1091
        %v1094 = vadd.f32 %v1067, %v1092
        %v1095 = vadd.f32 %v1068, %v1093
        %s1096 = sld [smem:[#allocation3 + $0x19c]]
        %v1097 = vstv %s1096
        %v1098 = vmul.f32 %v1076, %v1097
        %v1099 = vmul.f32 %v1077, %v1097
        %v1100 = vadd.f32 %v1073, %v1098
        %v1101 = vadd.f32 %v1074, %v1099
        %s1102 = scalar_lea.vmem %s293, 464 [#allocation9]
        %v1103 = vld [vmem:[%s1102] sm:$0xff]
        %v1104 = vld [vmem:[%s1102 + $0x8] sm:$0xff]
        %s1105 = sld [smem:[#allocation3 + $0x1d]]
        %v1106 = vstv %s1105
        %v1107 = vmul.f32 %v1103, %v1106
        %v1108 = vmul.f32 %v1104, %v1106
        %v1109 = vadd.f32 %v1082, %v1107
        %v1110 = vadd.f32 %v1083, %v1108
        %s1111 = sld [smem:[#allocation3 + $0x9d]]
        %v1112 = vstv %s1111
        %v1113 = vmul.f32 %v1103, %v1112
        %v1114 = vmul.f32 %v1104, %v1112
        %v1115 = vadd.f32 %v1088, %v1113
        %v1116 = vadd.f32 %v1089, %v1114
        %s1117 = sld [smem:[#allocation3 + $0x11d]]
        %v1118 = vstv %s1117
        %v1119 = vmul.f32 %v1103, %v1118
        %v1120 = vmul.f32 %v1104, %v1118
        %v1121 = vadd.f32 %v1094, %v1119
        %v1122 = vadd.f32 %v1095, %v1120
        %s1123 = sld [smem:[#allocation3 + $0x19d]]
        %v1124 = vstv %s1123
        %v1125 = vmul.f32 %v1103, %v1124
        %v1126 = vmul.f32 %v1104, %v1124
        %v1127 = vadd.f32 %v1100, %v1125
        %v1128 = vadd.f32 %v1101, %v1126
        %s1129 = scalar_lea.vmem %s293, 480 [#allocation9]
        %v1130 = vld [vmem:[%s1129] sm:$0xff]
        %v1131 = vld [vmem:[%s1129 + $0x8] sm:$0xff]
        %s1132 = sld [smem:[#allocation3 + $0x1e]]
        %v1133 = vstv %s1132
        %v1134 = vmul.f32 %v1130, %v1133
        %v1135 = vmul.f32 %v1131, %v1133
        %v1136 = vadd.f32 %v1109, %v1134
        %v1137 = vadd.f32 %v1110, %v1135
        %s1138 = sld [smem:[#allocation3 + $0x9e]]
        %v1139 = vstv %s1138
        %v1140 = vmul.f32 %v1130, %v1139
        %v1141 = vmul.f32 %v1131, %v1139
        %v1142 = vadd.f32 %v1115, %v1140
        %v1143 = vadd.f32 %v1116, %v1141
        %s1144 = sld [smem:[#allocation3 + $0x11e]]
        %v1145 = vstv %s1144
        %v1146 = vmul.f32 %v1130, %v1145
        %v1147 = vmul.f32 %v1131, %v1145
        %v1148 = vadd.f32 %v1121, %v1146
        %v1149 = vadd.f32 %v1122, %v1147
        %s1150 = sld [smem:[#allocation3 + $0x19e]]
        %v1151 = vstv %s1150
        %v1152 = vmul.f32 %v1130, %v1151
        %v1153 = vmul.f32 %v1131, %v1151
        %v1154 = vadd.f32 %v1127, %v1152
        %v1155 = vadd.f32 %v1128, %v1153
        %s1156 = scalar_lea.vmem %s293, 496 [#allocation9]
        %v1157 = vld [vmem:[%s1156] sm:$0xff]
        %v1158 = vld [vmem:[%s1156 + $0x8] sm:$0xff]
        %s1159 = sld [smem:[#allocation3 + $0x1f]]
        %v1160 = vstv %s1159
        %v1161 = vmul.f32 %v1157, %v1160
        %v1162 = vmul.f32 %v1158, %v1160
        %v1163 = vadd.f32 %v1136, %v1161
        %v1164 = vadd.f32 %v1137, %v1162
        %s1165 = sld [smem:[#allocation3 + $0x9f]]
        %v1166 = vstv %s1165
        %v1167 = vmul.f32 %v1157, %v1166
        %v1168 = vmul.f32 %v1158, %v1166
        %v1169 = vadd.f32 %v1142, %v1167
        %v1170 = vadd.f32 %v1143, %v1168
        %s1171 = sld [smem:[#allocation3 + $0x11f]]
        %v1172 = vstv %s1171
        %v1173 = vmul.f32 %v1157, %v1172
        %v1174 = vmul.f32 %v1158, %v1172
        %v1175 = vadd.f32 %v1148, %v1173
        %v1176 = vadd.f32 %v1149, %v1174
        %s1177 = sld [smem:[#allocation3 + $0x19f]]
        %v1178 = vstv %s1177
        %v1179 = vmul.f32 %v1157, %v1178
        %v1180 = vmul.f32 %v1158, %v1178
        %v1181 = vadd.f32 %v1154, %v1179
        %v1182 = vadd.f32 %v1155, %v1180
        %s1183 = sld [smem:[#allocation8]]
        %v1184 = vstv %s1183
        %v1185 = vadd.f32 %v1163, %v1184
        %v1186 = vadd.f32 %v1164, %v1184
        %vm1187 = vcmp.ge.f32.partialorder %v1185, 0.0
        %vm1188 = vcmp.ge.f32.partialorder %v1186, 0.0
        %v1189 = vstv %s327
        %v1190 = vmul.f32 %v1189, %v1185
        %v1191 = vmul.f32 %v1189, %v1186
        %v1192 = vsel %vm1187, %v1185, %v1190
        %v1193 = vsel %vm1188, %v1186, %v1191
        %vm1194 = vcmask 7168
        %v1195 = vsel %vm1194, %v1193, 0.0
        %v1196 = vadd.f32 %v1192, %v1195
        %1197 = vadd.xlane.f32.xlu0 %v1196
        %v1198 = vpop.xlane.xlu0 %1197
        %s1199 = sld [smem:[#allocation8 + $0x1]]
        %v1200 = vstv %s1199
        %v1201 = vadd.f32 %v1169, %v1200
        %v1202 = vadd.f32 %v1170, %v1200
        %vm1203 = vcmp.ge.f32.partialorder %v1201, 0.0
        %vm1204 = vcmp.ge.f32.partialorder %v1202, 0.0
        %v1205 = vmul.f32 %v1189, %v1201
        %v1206 = vmul.f32 %v1189, %v1202
        %v1207 = vsel %vm1203, %v1201, %v1205
        %v1208 = vsel %vm1204, %v1202, %v1206
        %v1209 = vsel %vm1194, %v1208, 0.0
        %v1210 = vadd.f32 %v1207, %v1209
        %1211 = vadd.xlane.f32.xlu0 %v1210
        %v1212 = vpop.xlane.xlu0 %1211
        %v1213 = vadd.f32 %v1198, %v1212
        %s1214 = sld [smem:[#allocation8 + $0x2]]
        %v1215 = vstv %s1214
        %v1216 = vadd.f32 %v1175, %v1215
        %v1217 = vadd.f32 %v1176, %v1215
        %vm1218 = vcmp.ge.f32.partialorder %v1216, 0.0
        %vm1219 = vcmp.ge.f32.partialorder %v1217, 0.0
        %v1220 = vmul.f32 %v1189, %v1216
        %v1221 = vmul.f32 %v1189, %v1217
        %v1222 = vsel %vm1218, %v1216, %v1220
        %v1223 = vsel %vm1219, %v1217, %v1221
        %v1224 = vsel %vm1194, %v1223, 0.0
        %v1225 = vadd.f32 %v1222, %v1224
        %1226 = vadd.xlane.f32.xlu0 %v1225
        %v1227 = vpop.xlane.xlu0 %1226
        %v1228 = vadd.f32 %v1213, %v1227
        %s1229 = sld [smem:[#allocation8 + $0x3]]
        %v1230 = vstv %s1229
        %v1231 = vadd.f32 %v1181, %v1230
        %v1232 = vadd.f32 %v1182, %v1230
        %vm1233 = vcmp.ge.f32.partialorder %v1231, 0.0
        %vm1234 = vcmp.ge.f32.partialorder %v1232, 0.0
        %v1235 = vmul.f32 %v1189, %v1231
        %v1236 = vmul.f32 %v1189, %v1232
        %v1237 = vsel %vm1233, %v1231, %v1235
        %v1238 = vsel %vm1234, %v1232, %v1236
        %v1239 = vsel %vm1194, %v1238, 0.0
        %v1240 = vadd.f32 %v1237, %v1239
        %1241 = vadd.xlane.f32.xlu0 %v1240
        %v1242 = vpop.xlane.xlu0 %1241
        %v1243 = vadd.f32 %v1228, %v1242
        %v1244 = vmul.f32 %v1243, 0.0019379845
        %v1245 = vsub.f32 %v1192, %v1244
        %v1246 = vsub.f32 %v1193, %v1244
        %v1247 = vmul.f32 %v1245, %v1245
        %v1248 = vmul.f32 %v1246, %v1246
        %v1249 = vsel %vm1194, %v1248, 0.0
        %v1250 = vadd.f32 %v1247, %v1249
        %1251 = vadd.xlane.f32.xlu0 %v1250
        %v1252 = vpop.xlane.xlu0 %1251
        %v1253 = vsub.f32 %v1207, %v1244
        %v1254 = vsub.f32 %v1208, %v1244
        %v1255 = vmul.f32 %v1253, %v1253
        %v1256 = vmul.f32 %v1254, %v1254
        %v1257 = vsel %vm1194, %v1256, 0.0
        %v1258 = vadd.f32 %v1255, %v1257
        %1259 = vadd.xlane.f32.xlu0 %v1258
        %v1260 = vpop.xlane.xlu0 %1259
        %v1261 = vadd.f32 %v1252, %v1260
        %v1262 = vsub.f32 %v1222, %v1244
        %v1263 = vsub.f32 %v1223, %v1244
        %v1264 = vmul.f32 %v1262, %v1262
        %v1265 = vmul.f32 %v1263, %v1263
        %v1266 = vsel %vm1194, %v1265, 0.0
        %v1267 = vadd.f32 %v1264, %v1266
        %1268 = vadd.xlane.f32.xlu0 %v1267
        %v1269 = vpop.xlane.xlu0 %1268
        %v1270 = vadd.f32 %v1261, %v1269
        %v1271 = vsub.f32 %v1237, %v1244
        %v1272 = vsub.f32 %v1238, %v1244
        %v1273 = vmul.f32 %v1271, %v1271
        %v1274 = vmul.f32 %v1272, %v1272
        %v1275 = vsel %vm1194, %v1274, 0.0
        %v1276 = vadd.f32 %v1273, %v1275
        %1277 = vadd.xlane.f32.xlu0 %v1276
        %v1278 = vpop.xlane.xlu0 %1277
        %v1279 = vadd.f32 %v1270, %v1278
        %v1280 = vmul.f32 %v1279, 0.0019379845
        %v1281 = vadd.f32 %v1280, 1e-05
        %v1282 = vrsqrt.pop %v1281
        %v1283 = vld [vmem:[%s4] ss:$4 sm:$0x3]
        %v1284 = vld [vmem:[#allocation10] ss:$4 sm:$0x3]
        %v1285 = vmul.f32 %v1245, %v1282
        %v1286 = vmul.f32 %v1246, %v1282
        %v1288 = vlaneseq
        %v1289 = vshrl.u32 %v1288, 7
        %v1290 = vsub.s32 0, %v1289
        %v1291 = vrot.slane %v1283, %v1290
        %v1292 = vlaneseq
        %v1293 = vshrl.u32 %v1292, 7
        %v1294 = vsub.s32 1, %v1293
        %v1295 = vrot.slane %v1283, %v1294
        %v1298 = vmul.f32 %v1285, %v1291
        %v1299 = vmul.f32 %v1286, %v1295
        %v1301 = vlaneseq
        %v1302 = vshrl.u32 %v1301, 7
        %v1303 = vsub.s32 0, %v1302
        %v1304 = vrot.slane %v1284, %v1303
        %v1305 = vlaneseq
        %v1306 = vshrl.u32 %v1305, 7
        %v1307 = vsub.s32 1, %v1306
        %v1308 = vrot.slane %v1284, %v1307
        %v1311 = vadd.f32 %v1298, %v1304
        %v1312 = vadd.f32 %v1299, %v1308
        %1313 = vst [vmem:[%s326] sm:$0xff] %v1311
        %1314 = vst.msk [vmem:[%s326 + $0x8] sm:$0xff] %vm1194, %v1312
        %s1315 = scalar_lea.vmem %s4, 1
        %v1316 = vld [vmem:[%s1315] ss:$4 sm:$0x3]
        %s1317 = scalar_lea.vmem [#allocation10], 1
        %v1318 = vld [vmem:[%s1317] ss:$4 sm:$0x3]
        %v1319 = vmul.f32 %v1253, %v1282
        %v1320 = vmul.f32 %v1254, %v1282
        %v1322 = vlaneseq
        %v1323 = vshrl.u32 %v1322, 7
        %v1324 = vsub.s32 0, %v1323
        %v1325 = vrot.slane %v1316, %v1324
        %v1326 = vlaneseq
        %v1327 = vshrl.u32 %v1326, 7
        %v1328 = vsub.s32 1, %v1327
        %v1329 = vrot.slane %v1316, %v1328
        %v1332 = vmul.f32 %v1319, %v1325
        %v1333 = vmul.f32 %v1320, %v1329
        %v1335 = vlaneseq
        %v1336 = vshrl.u32 %v1335, 7
        %v1337 = vsub.s32 0, %v1336
        %v1338 = vrot.slane %v1318, %v1337
        %v1339 = vlaneseq
        %v1340 = vshrl.u32 %v1339, 7
        %v1341 = vsub.s32 1, %v1340
        %v1342 = vrot.slane %v1318, %v1341
        %v1345 = vadd.f32 %v1332, %v1338
        %v1346 = vadd.f32 %v1333, %v1342
        %s1347 = scalar_lea.vmem %s326, 16 [#allocation12]
        %1348 = vst [vmem:[%s1347] sm:$0xff] %v1345
        %1349 = vst.msk [vmem:[%s1347 + $0x8] sm:$0xff] %vm1194, %v1346
        %s1350 = scalar_lea.vmem %s4, 2
        %v1351 = vld [vmem:[%s1350] ss:$4 sm:$0x3]
        %s1352 = scalar_lea.vmem [#allocation10], 2
        %v1353 = vld [vmem:[%s1352] ss:$4 sm:$0x3]
        %v1354 = vmul.f32 %v1262, %v1282
        %v1355 = vmul.f32 %v1263, %v1282
        %v1357 = vlaneseq
        %v1358 = vshrl.u32 %v1357, 7
        %v1359 = vsub.s32 0, %v1358
        %v1360 = vrot.slane %v1351, %v1359
        %v1361 = vlaneseq
        %v1362 = vshrl.u32 %v1361, 7
        %v1363 = vsub.s32 1, %v1362
        %v1364 = vrot.slane %v1351, %v1363
        %v1367 = vmul.f32 %v1354, %v1360
        %v1368 = vmul.f32 %v1355, %v1364
        %v1370 = vlaneseq
        %v1371 = vshrl.u32 %v1370, 7
        %v1372 = vsub.s32 0, %v1371
        %v1373 = vrot.slane %v1353, %v1372
        %v1374 = vlaneseq
        %v1375 = vshrl.u32 %v1374, 7
        %v1376 = vsub.s32 1, %v1375
        %v1377 = vrot.slane %v1353, %v1376
        %v1380 = vadd.f32 %v1367, %v1373
        %v1381 = vadd.f32 %v1368, %v1377
        %s1382 = scalar_lea.vmem %s326, 32 [#allocation12]
        %1383 = vst [vmem:[%s1382] sm:$0xff] %v1380
        %1384 = vst.msk [vmem:[%s1382 + $0x8] sm:$0xff] %vm1194, %v1381
        %s1385 = scalar_lea.vmem %s4, 3
        %v1386 = vld [vmem:[%s1385] ss:$4 sm:$0x3]
        %s1387 = scalar_lea.vmem [#allocation10], 3
        %v1388 = vld [vmem:[%s1387] ss:$4 sm:$0x3]
        %v1389 = vmul.f32 %v1271, %v1282
        %v1390 = vmul.f32 %v1272, %v1282
        %v1392 = vlaneseq
        %v1393 = vshrl.u32 %v1392, 7
        %v1394 = vsub.s32 0, %v1393
        %v1395 = vrot.slane %v1386, %v1394
        %v1396 = vlaneseq
        %v1397 = vshrl.u32 %v1396, 7
        %v1398 = vsub.s32 1, %v1397
        %v1399 = vrot.slane %v1386, %v1398
        %v1402 = vmul.f32 %v1389, %v1395
        %v1403 = vmul.f32 %v1390, %v1399
        %v1405 = vlaneseq
        %v1406 = vshrl.u32 %v1405, 7
        %v1407 = vsub.s32 0, %v1406
        %v1408 = vrot.slane %v1388, %v1407
        %v1409 = vlaneseq
        %v1410 = vshrl.u32 %v1409, 7
        %v1411 = vsub.s32 1, %v1410
        %v1412 = vrot.slane %v1388, %v1411
        %v1415 = vadd.f32 %v1402, %v1408
        %v1416 = vadd.f32 %v1403, %v1412
        %s1417 = scalar_lea.vmem %s326, 48 [#allocation12]
        %1418 = vst [vmem:[%s1417] sm:$0xff] %v1415
        %1419 = vst.msk [vmem:[%s1417 + $0x8] sm:$0xff] %vm1194, %v1416
        %s1420 = sand.u32 %s182, 1
        %s1421 = scalar_lea.sflag [#allocation5], %s1420
        %s1422 = sand.u32 %s182, 1
        %s1423 = smul.addr %s1422, 64
        %s1424 = scalar_lea.vmem [#allocation12], %s1423
        // Predicated region
        $region61: #{generator_forward.1} parent=43 // pred_check
          %p1425 = pneg %p192
        $region62: #{generator_forward.1} parent=43 // pred_check_branch
          %1427 = sbr.rel (%p1425) target = $region64
        $region63: #{generator_forward.1} parent=43 // pred_region
          %s1429 = ssub.s32 1024, 1024
          %1430 = vsyncadd %s1421, %s1429
          %s1431 = smul.addr %s32, 2
          %s1432 = smul.addr %s31, 8
          %s1433 = sadd.s32 %s1431, %s1432
          %s1434 = smul.addr %s1433, 128
          %s1435 = scalar_lea.hbm %s6, %s1434
          %s1436 = sshll.u32 %s1424, 4
          %s1437 = int_to_ptr.vmem [resolvable:$true] %s1436
          %1442 = dma.vmem_to_hbm [thread:$0]  %s1437, 1024, %s1435, %s1421, 256, 256, 16
        $region64: #{generator_forward.1} parent=43 // pred_fallthru
          _
      $region44: #{generator_forward.1} parent=5 // pred_fallthru
        _
      %p1443 = scmp.le.s32.totalorder 2, %s22
      // Predicated region
      $region65: #{generator_forward.1} parent=5 // pred_check
        %p1444 = pneg %p1443
      $region66: #{generator_forward.1} parent=5 // pred_check_branch
        %1446 = sbr.rel (%p1444) target = $region68
      $region67: #{generator_forward.1} parent=5 // pred_region
        %s1447 = ssub.s32 %s22, 2
        // Predicated region
        $region69: #{generator_forward.1} parent=67 // pred_check
          %p1448 = pneg %p198
        $region70: #{generator_forward.1} parent=67 // pred_check_branch
          %1450 = sbr.rel (%p1448) target = $region72
        $region71: #{generator_forward.1} parent=67 // pred_region
          %s1451 = sand.u32 %s183, 1
          %s1452 = scalar_lea.sflag [#allocation5], %s1451
          %s1453 = sand.u32 %s183, 1
          %s1454 = smul.addr %s1453, 64
          %s1455 = scalar_lea.vmem [#allocation12], %s1454
          %1456 = dma.done %s1452, 1024
        $region72: #{generator_forward.1} parent=67 // pred_fallthru
          _
      $region68: #{generator_forward.1} parent=5 // pred_fallthru
        _
    $region6: #{generator_forward.1} parent=1 // loop_footer
      %s26 = sadd.s32 1, %s22
    $region7: #{generator_forward.1} parent=1 // loop_footer_branch
      %21 = sbr.rel target = $region3
    $region8: #{generator_forward.1} parent=1 // loop_exit
      _
    %1457 = vsyncpa [#allocation4], 1
    %s1458 = scalar_lea.sflag [#allocation4], 1
    %1459 = vsyncpa %s1458, 1
    %1460 = vsyncpa [#allocation11], 1
    %1461 = vsyncpa [#allocation5], 1
    %s1462 = scalar_lea.sflag [#allocation5], 1
    %1463 = vsyncpa %s1462, 1
    %1464 = vsyncpa [#allocation6], 1
    %s1465 = scalar_lea.sflag [#allocation6], 1
    %1466 = vsyncpa %s1465, 1
    %1467 = vsyncpa [#allocation7], 1
    %s1468 = scalar_lea.sflag [#allocation7], 1
    %1469 = vsyncpa %s1468, 1

</llo_original>
